<compile_context>
chip_gen: v5e
topology: v5e:2x2
jax: 0.10.0
libtpu: 0.0.40
codegen_flags: <defaults>
</compile_context>

<pallas_src>
import numpy as np
import jax
import jax.numpy as jnp
from jax import lax
from jax.experimental import pallas as pl
from jax.experimental.pallas import tpu as pltpu

K_ECA = 3           # ECA conv1d kernel size
K_SA = 7            # SpatialAttention conv2d kernel size
PAD_SA = K_SA // 2  # = 3


def _make_eca_kernel(C, H, W):
    HW = H * W
    PW = HW + 2 * PAD_SA * W          # width of a dx-shifted, row-padded map
    PL = PAD_SA * W + PAD_SA          # one-sided lane pad of the avg/max maps
    inv_hw = 1.0 / float(HW)
    inv_c = 1.0 / float(C)

    def kernel(w_eca_ref, w_sa_ref, b_sa_ref, mask_ref, x_ref, out_ref):
        # x_ref / out_ref: (Nb, C, HW) VMEM block (input dtype).
        # w_eca (3,), w_sa (98,), b_sa (1,) in SMEM; mask_ref (7, PW) f32 in VMEM.
        Nb = x_ref.shape[0]
        x = x_ref[...]                                             # (Nb, C, HW), no upcast

        # ---- ECA gate: channel mean (f32 accum) -> 3-tap conv along C (sublanes) -> sigmoid.
        m = jnp.sum(x, axis=2, keepdims=True, dtype=jnp.float32) * inv_hw   # (Nb, C, 1)
        zc = jnp.zeros((Nb, 1, 1), jnp.float32)
        mp = jnp.concatenate([zc, m, zc], axis=1)                  # (Nb, C+2, 1)
        gate = (w_eca_ref[0] * mp[:, 0:C]
                + w_eca_ref[1] * mp[:, 1:C + 1]
                + w_eca_ref[2] * mp[:, 2:C + 2])                   # (Nb, C, 1) f32
        gate = jax.nn.sigmoid(gate).astype(x.dtype)
        x_eca = x * gate                                           # (Nb, C, HW), input dtype

        # ---- spatial-attention inputs: mean (f32 accum) / max over channels
        avg = jnp.sum(x_eca, axis=1, dtype=jnp.float32) * inv_c    # (Nb, HW) f32
        mx = jnp.max(x_eca, axis=1).astype(jnp.float32)            # (Nb, HW) f32 (small map)

        # Lane-pad once so each dx-shifted, row-padded map is a single static slice.
        zp = jnp.zeros((Nb, PL), jnp.float32)
        avg_p = jnp.concatenate([zp, avg, zp], axis=1)             # (Nb, HW + 2*PL)
        mx_p = jnp.concatenate([zp, mx, zp], axis=1)

        msk = mask_ref[...]                                        # (7, PW) f32 0/1

        # 7x7 SAME conv over [avg; max], fully unrolled: dx shift hoisted, dy slices at
        # multiples of W only.  Bias folded into the final add; no zero-init accumulator.
        acc = None
        for dx in range(K_SA):
            xm = msk[dx:dx + 1, :]                                 # (1, PW)
            a_dx = avg_p[:, dx:dx + PW] * xm                       # masked dx-shifted map
            m_dx = mx_p[:, dx:dx + PW] * xm
            for dy in range(K_SA):
                off = dy * W
                term = (w_sa_ref[0 * K_SA * K_SA + dy * K_SA + dx] * a_dx[:, off:off + HW]
                        + w_sa_ref[1 * K_SA * K_SA + dy * K_SA + dx] * m_dx[:, off:off + HW])
                acc = term if acc is None else acc + term
        sa = jax.nn.sigmoid(acc + b_sa_ref[0]).astype(x.dtype)     # (Nb, HW)

        # ---- out = x_eca * spatial_attention : single dense store in the input dtype
        out_ref[...] = (x_eca * sa[:, None, :]).astype(out_ref.dtype)

    return kernel


def _pick_batch_block(N, per_n_bytes, budget_bytes=8 << 20):
    """Largest divisor of N fitting the budget, capped at N//2 so the grid has >= 2 steps
    (megacore sharding on v7x + software-pipeline overlap of the in/out DMAs)."""
    cap = max(1, N // 2)
    nb = 1
    for d in range(1, cap + 1):
        if N % d == 0 and d * per_n_bytes <= budget_bytes:
            nb = d
    return nb


def eca_forward(x, w_eca, w_sa, b_sa):
    N, C, H, W = x.shape
    HW = H * W
    PW = HW + 2 * PAD_SA * W
    x2 = x.reshape(N, C, HW)                          # contiguous reshape: free in XLA
    w_eca = w_eca.reshape(-1).astype(jnp.float32)     # (3,)
    w_sa_flat = w_sa.reshape(-1).astype(jnp.float32)  # (2*7*7,) indexed [i, dy, dx]
    b_sa = b_sa.reshape(-1).astype(jnp.float32)       # (1,)

    # Per-dx validity masks in the row-padded flattened layout: one multiply per dx zeroes both
    # the +/-3-row padding and the horizontal wrap-around of the 7x7 SAME conv.
    q = np.arange(PW)
    p = q - PAD_SA * W
    col = p % W
    interior = (p >= 0) & (p < HW)
    masks = jnp.asarray(np.stack(
        [(interior & (col + dx - PAD_SA >= 0) & (col + dx - PAD_SA < W)).astype(np.float32)
         for dx in range(K_SA)], axis=0))             # (7, PW)

    per_n_bytes = 2 * C * HW * x.dtype.itemsize       # in + out per batch element
    Nb = _pick_batch_block(N, per_n_bytes)
    block_bytes = Nb * per_n_bytes

    # Double-buffered in/out blocks + x_eca + small f32 maps, with generous slack.
    vmem_limit = int(min(96 << 20, max(32 << 20, 4 * block_bytes + (8 << 20))))

    # TODO(synk): add an HW/row-tile grid axis with a +/-3-row halo (channel-gate means
    # precomputed in a cheap first pass) so one block never holds a whole image — needed for
    # production shapes (e.g. C=256, 128x128) on v7x's 64 MiB VMEM.
    # TODO(synk): for late-stage maps with HW < 128, repack channels into the lane axis to
    # avoid masked partial stores.

    cost = pl.CostEstimate(
        flops=int(N * (6 * C * HW + 4 * K_SA * K_SA * HW + 6 * C)),
        transcendentals=int(N * (C + HW)),
        bytes_accessed=int(2 * N * C * HW * x.dtype.itemsize),
    )

    out2 = pl.pallas_call(
        _make_eca_kernel(C, H, W),
        out_shape=jax.ShapeDtypeStruct((N, C, HW), x.dtype),
        grid_spec=pltpu.PrefetchScalarGridSpec(
            num_scalar_prefetch=0,
            grid=(N // Nb,),
            in_specs=[
                pl.BlockSpec(memory_space=pltpu.SMEM),               # w_eca (3,)
                pl.BlockSpec(memory_space=pltpu.SMEM),               # w_sa flat (98,)
                pl.BlockSpec(memory_space=pltpu.SMEM),               # b_sa (1,)
                pl.BlockSpec((K_SA, PW), lambda n: (0, 0)),          # masks (constant block)
                pl.BlockSpec((Nb, C, HW), lambda n: (n, 0, 0)),      # x
            ],
            out_specs=pl.BlockSpec((Nb, C, HW), lambda n: (n, 0, 0)),
        ),
        compiler_params=pltpu.CompilerParams(
            dimension_semantics=("parallel",),
            vmem_limit_bytes=vmem_limit,
        ),
        cost_estimate=cost,
    )(w_eca, w_sa_flat, b_sa, masks, x2)

    return out2.reshape(N, C, H, W)


def eca_reference(x, w_eca, w_sa, b_sa):
    """Pure-JAX reference reproducing the PyTorch ECA.forward semantics."""
    N, C, H, W = x.shape
    y = jnp.mean(x, axis=(2, 3))                      # (N, C)
    yp = jnp.pad(y, ((0, 0), (1, 1)))                 # (N, C+2)
    y1 = sum(w_eca[k] * yp[:, k:k + C] for k in range(K_ECA))
    y1 = jax.nn.sigmoid(y1)[:, :, None, None]         # (N, C, 1, 1)
    x_eca = x * y1
    avg = jnp.mean(x_eca, axis=1, keepdims=True)
    mx = jnp.max(x_eca, axis=1, keepdims=True)
    cat = jnp.concatenate([avg, mx], axis=1)          # (N, 2, H, W)
    conv = lax.conv_general_dilated(
        cat, w_sa.reshape(1, 2, K_SA, K_SA), (1, 1),
        padding=((PAD_SA, PAD_SA), (PAD_SA, PAD_SA)),
        dimension_numbers=("NCHW", "OIHW", "NCHW"),
    ) + b_sa.reshape(1, 1, 1, 1)
    sa = jax.nn.sigmoid(conv)
    return x_eca * sa


if __name__ == "__main__":
    key = jax.random.PRNGKey(0)
    k1, k2, k3, k4 = jax.random.split(key, 4)

    # Shapes from nn.Conv1d(1,1,3,bias=False) and nn.Conv2d(2,1,7) of the PyTorch module.
    w_eca = jax.random.normal(k1, (K_ECA,), jnp.float32) * 0.5          # conv1d weight squeezed
    w_sa = jax.random.normal(k2, (2, K_SA, K_SA), jnp.float32) * 0.1    # conv2d weight squeezed
    b_sa = jax.random.normal(k3, (1,), jnp.float32) * 0.1               # conv2d bias

    x = jax.random.normal(k4, (2, 4, 16, 16), jnp.float32)              # (N, C, H, W)

    out = jax.block_until_ready(eca_forward(x, w_eca, w_sa, b_sa))
    ref = jax.block_until_ready(eca_reference(x, w_eca, w_sa, b_sa))
    np.testing.assert_allclose(np.asarray(out), np.asarray(ref), rtol=3e-4, atol=1e-4)

    print("KERNEL_OK")
</pallas_src>

<mosaic_0001>
module attributes {stable_mosaic.version = 11 : i64} {
  func.func @kernel(%arg0: i32, %arg1: memref<3xf32, #tpu.memory_space<smem>>, %arg2: memref<98xf32, #tpu.memory_space<smem>>, %arg3: memref<1xf32, #tpu.memory_space<smem>>, %arg4: memref<7x352xf32, #tpu.memory_space<vmem>>, %arg5: memref<1x4x256xf32, #tpu.memory_space<vmem>>, %arg6: memref<1x4x256xf32, #tpu.memory_space<vmem>>) attributes {dimension_semantics = [#tpu.dimension_semantics<parallel>], iteration_bounds = array<i64: 2>, scalar_prefetch = 0 : i64, scratch_operands = 0 : i64, tpu.core_type = #tpu.core_type<tc>, window_params = [{transform_indices = @transform_0, window_bounds = array<i64: 3>}, {transform_indices = @transform_1, window_bounds = array<i64: 98>}, {transform_indices = @transform_2, window_bounds = array<i64: 1>}, {pipeline_mode = #tpu.pipeline_mode<synchronous>, transform_indices = @transform_3, window_bounds = array<i64: 7, 352>}, {transform_indices = @transform_4, window_bounds = array<i64: 1, 4, 256>}, {transform_indices = @transform_5, window_bounds = array<i64: 1, 4, 256>}]} {
    %c0 = arith.constant 0 : index
    %c0_0 = arith.constant 0 : index
    %c0_1 = arith.constant 0 : index
    %0 = vector.load %arg5[%c0, %c0_0, %c0_1] : memref<1x4x256xf32, #tpu.memory_space<vmem>>, vector<1x4x256xf32>
    %cst = arith.constant dense<0.000000e+00> : vector<1x4xf32>
    %1 = vector.multi_reduction <add>, %0, %cst [2] : vector<1x4x256xf32> to vector<1x4xf32>
    %2 = vector.shape_cast %1 : vector<1x4xf32> to vector<1x4x1xf32>
    %cst_2 = arith.constant 3.906250e-03 : f32
    %3 = vector.broadcast %cst_2 : f32 to vector<1x4x1xf32>
    %4 = arith.mulf %2, %3 : vector<1x4x1xf32>
    %cst_3 = arith.constant 0.000000e+00 : f32
    %5 = vector.broadcast %cst_3 : f32 to vector<1x1x1xf32>
    %6 = tpu.concatenate %5, %4, %5 in 1 : vector<1x1x1xf32>, vector<1x4x1xf32>, vector<1x1x1xf32> -> vector<1x6x1xf32>
    %c0_4 = arith.constant 0 : index
    %7 = memref.load %arg1[%c0_4] : memref<3xf32, #tpu.memory_space<smem>>
    %8 = vector.extract_strided_slice %6 {offsets = [0, 0, 0], sizes = [1, 4, 1], strides = [1, 1, 1]} : vector<1x6x1xf32> to vector<1x4x1xf32>
    %9 = vector.broadcast %7 : f32 to vector<1x4x1xf32>
    %10 = arith.mulf %9, %8 : vector<1x4x1xf32>
    %c1 = arith.constant 1 : index
    %11 = memref.load %arg1[%c1] : memref<3xf32, #tpu.memory_space<smem>>
    %12 = vector.extract_strided_slice %6 {offsets = [0, 1, 0], sizes = [1, 4, 1], strides = [1, 1, 1]} : vector<1x6x1xf32> to vector<1x4x1xf32>
    %13 = vector.broadcast %11 : f32 to vector<1x4x1xf32>
    %14 = arith.mulf %13, %12 : vector<1x4x1xf32>
    %15 = arith.addf %10, %14 : vector<1x4x1xf32>
    %c2 = arith.constant 2 : index
    %16 = memref.load %arg1[%c2] : memref<3xf32, #tpu.memory_space<smem>>
    %17 = vector.extract_strided_slice %6 {offsets = [0, 2, 0], sizes = [1, 4, 1], strides = [1, 1, 1]} : vector<1x6x1xf32> to vector<1x4x1xf32>
    %18 = vector.broadcast %16 : f32 to vector<1x4x1xf32>
    %19 = arith.mulf %18, %17 : vector<1x4x1xf32>
    %20 = arith.addf %15, %19 : vector<1x4x1xf32>
    %21 = arith.negf %20 : vector<1x4x1xf32>
    %22 = math.exp %21 : vector<1x4x1xf32>
    %cst_5 = arith.constant 1.000000e+00 : f32
    %23 = vector.broadcast %cst_5 : f32 to vector<1x4x1xf32>
    %24 = arith.addf %23, %22 : vector<1x4x1xf32>
    %25 = arith.divf %23, %24 : vector<1x4x1xf32>
    %26 = vector.broadcast %25 : vector<1x4x1xf32> to vector<1x4x256xf32>
    %27 = arith.mulf %0, %26 : vector<1x4x256xf32>
    %cst_6 = arith.constant dense<0.000000e+00> : vector<1x256xf32>
    %28 = vector.multi_reduction <add>, %27, %cst_6 [1] : vector<1x4x256xf32> to vector<1x256xf32>
    %cst_7 = arith.constant 2.500000e-01 : f32
    %29 = vector.broadcast %cst_7 : f32 to vector<1x256xf32>
    %30 = arith.mulf %28, %29 : vector<1x256xf32>
    %cst_8 = arith.constant dense<0xFF800000> : vector<1x256xf32>
    %31 = vector.multi_reduction <maximumf>, %27, %cst_8 [1] : vector<1x4x256xf32> to vector<1x256xf32>
    %cst_9 = arith.constant 0.000000e+00 : f32
    %32 = vector.broadcast %cst_9 : f32 to vector<1x51xf32>
    %33 = tpu.concatenate %32, %30, %32 in 1 : vector<1x51xf32>, vector<1x256xf32>, vector<1x51xf32> -> vector<1x358xf32>
    %34 = tpu.concatenate %32, %31, %32 in 1 : vector<1x51xf32>, vector<1x256xf32>, vector<1x51xf32> -> vector<1x358xf32>
    %c0_10 = arith.constant 0 : index
    %c0_11 = arith.constant 0 : index
    %35 = vector.load %arg4[%c0_10, %c0_11] : memref<7x352xf32, #tpu.memory_space<vmem>>, vector<7x352xf32>
    %36 = vector.extract_strided_slice %35 {offsets = [0, 0], sizes = [1, 352], strides = [1, 1]} : vector<7x352xf32> to vector<1x352xf32>
    %37 = vector.extract_strided_slice %33 {offsets = [0, 0], sizes = [1, 352], strides = [1, 1]} : vector<1x358xf32> to vector<1x352xf32>
    %38 = arith.mulf %37, %36 : vector<1x352xf32>
    %39 = vector.extract_strided_slice %34 {offsets = [0, 0], sizes = [1, 352], strides = [1, 1]} : vector<1x358xf32> to vector<1x352xf32>
    %40 = arith.mulf %39, %36 : vector<1x352xf32>
    %c0_12 = arith.constant 0 : index
    %41 = memref.load %arg2[%c0_12] : memref<98xf32, #tpu.memory_space<smem>>
    %42 = vector.extract_strided_slice %38 {offsets = [0, 0], sizes = [1, 256], strides = [1, 1]} : vector<1x352xf32> to vector<1x256xf32>
    %43 = vector.broadcast %41 : f32 to vector<1x256xf32>
    %44 = arith.mulf %43, %42 : vector<1x256xf32>
    %c49 = arith.constant 49 : index
    %45 = memref.load %arg2[%c49] : memref<98xf32, #tpu.memory_space<smem>>
    %46 = vector.extract_strided_slice %40 {offsets = [0, 0], sizes = [1, 256], strides = [1, 1]} : vector<1x352xf32> to vector<1x256xf32>
    %47 = vector.broadcast %45 : f32 to vector<1x256xf32>
    %48 = arith.mulf %47, %46 : vector<1x256xf32>
    %49 = arith.addf %44, %48 : vector<1x256xf32>
    %c7 = arith.constant 7 : index
    %50 = memref.load %arg2[%c7] : memref<98xf32, #tpu.memory_space<smem>>
    %51 = vector.extract_strided_slice %38 {offsets = [0, 16], sizes = [1, 256], strides = [1, 1]} : vector<1x352xf32> to vector<1x256xf32>
    %52 = vector.broadcast %50 : f32 to vector<1x256xf32>
    %53 = arith.mulf %52, %51 : vector<1x256xf32>
    %c56 = arith.constant 56 : index
    %54 = memref.load %arg2[%c56] : memref<98xf32, #tpu.memory_space<smem>>
    %55 = vector.extract_strided_slice %40 {offsets = [0, 16], sizes = [1, 256], strides = [1, 1]} : vector<1x352xf32> to vector<1x256xf32>
    %56 = vector.broadcast %54 : f32 to vector<1x256xf32>
    %57 = arith.mulf %56, %55 : vector<1x256xf32>
    %58 = arith.addf %53, %57 : vector<1x256xf32>
    %59 = arith.addf %49, %58 : vector<1x256xf32>
    %c14 = arith.constant 14 : index
    %60 = memref.load %arg2[%c14] : memref<98xf32, #tpu.memory_space<smem>>
    %61 = vector.extract_strided_slice %38 {offsets = [0, 32], sizes = [1, 256], strides = [1, 1]} : vector<1x352xf32> to vector<1x256xf32>
    %62 = vector.broadcast %60 : f32 to vector<1x256xf32>
    %63 = arith.mulf %62, %61 : vector<1x256xf32>
    %c63 = arith.constant 63 : index
    %64 = memref.load %arg2[%c63] : memref<98xf32, #tpu.memory_space<smem>>
    %65 = vector.extract_strided_slice %40 {offsets = [0, 32], sizes = [1, 256], strides = [1, 1]} : vector<1x352xf32> to vector<1x256xf32>
    %66 = vector.broadcast %64 : f32 to vector<1x256xf32>
    %67 = arith.mulf %66, %65 : vector<1x256xf32>
    %68 = arith.addf %63, %67 : vector<1x256xf32>
    %69 = arith.addf %59, %68 : vector<1x256xf32>
    %c21 = arith.constant 21 : index
    %70 = memref.load %arg2[%c21] : memref<98xf32, #tpu.memory_space<smem>>
    %71 = vector.extract_strided_slice %38 {offsets = [0, 48], sizes = [1, 256], strides = [1, 1]} : vector<1x352xf32> to vector<1x256xf32>
    %72 = vector.broadcast %70 : f32 to vector<1x256xf32>
    %73 = arith.mulf %72, %71 : vector<1x256xf32>
    %c70 = arith.constant 70 : index
    %74 = memref.load %arg2[%c70] : memref<98xf32, #tpu.memory_space<smem>>
    %75 = vector.extract_strided_slice %40 {offsets = [0, 48], sizes = [1, 256], strides = [1, 1]} : vector<1x352xf32> to vector<1x256xf32>
    %76 = vector.broadcast %74 : f32 to vector<1x256xf32>
    %77 = arith.mulf %76, %75 : vector<1x256xf32>
    %78 = arith.addf %73, %77 : vector<1x256xf32>
    %79 = arith.addf %69, %78 : vector<1x256xf32>
    %c28 = arith.constant 28 : index
    %80 = memref.load %arg2[%c28] : memref<98xf32, #tpu.memory_space<smem>>
    %81 = vector.extract_strided_slice %38 {offsets = [0, 64], sizes = [1, 256], strides = [1, 1]} : vector<1x352xf32> to vector<1x256xf32>
    %82 = vector.broadcast %80 : f32 to vector<1x256xf32>
    %83 = arith.mulf %82, %81 : vector<1x256xf32>
    %c77 = arith.constant 77 : index
    %84 = memref.load %arg2[%c77] : memref<98xf32, #tpu.memory_space<smem>>
    %85 = vector.extract_strided_slice %40 {offsets = [0, 64], sizes = [1, 256], strides = [1, 1]} : vector<1x352xf32> to vector<1x256xf32>
    %86 = vector.broadcast %84 : f32 to vector<1x256xf32>
    %87 = arith.mulf %86, %85 : vector<1x256xf32>
    %88 = arith.addf %83, %87 : vector<1x256xf32>
    %89 = arith.addf %79, %88 : vector<1x256xf32>
    %c35 = arith.constant 35 : index
    %90 = memref.load %arg2[%c35] : memref<98xf32, #tpu.memory_space<smem>>
    %91 = vector.extract_strided_slice %38 {offsets = [0, 80], sizes = [1, 256], strides = [1, 1]} : vector<1x352xf32> to vector<1x256xf32>
    %92 = vector.broadcast %90 : f32 to vector<1x256xf32>
    %93 = arith.mulf %92, %91 : vector<1x256xf32>
    %c84 = arith.constant 84 : index
    %94 = memref.load %arg2[%c84] : memref<98xf32, #tpu.memory_space<smem>>
    %95 = vector.extract_strided_slice %40 {offsets = [0, 80], sizes = [1, 256], strides = [1, 1]} : vector<1x352xf32> to vector<1x256xf32>
    %96 = vector.broadcast %94 : f32 to vector<1x256xf32>
    %97 = arith.mulf %96, %95 : vector<1x256xf32>
    %98 = arith.addf %93, %97 : vector<1x256xf32>
    %99 = arith.addf %89, %98 : vector<1x256xf32>
    %c42 = arith.constant 42 : index
    %100 = memref.load %arg2[%c42] : memref<98xf32, #tpu.memory_space<smem>>
    %101 = vector.extract_strided_slice %38 {offsets = [0, 96], sizes = [1, 256], strides = [1, 1]} : vector<1x352xf32> to vector<1x256xf32>
    %102 = vector.broadcast %100 : f32 to vector<1x256xf32>
    %103 = arith.mulf %102, %101 : vector<1x256xf32>
    %c91 = arith.constant 91 : index
    %104 = memref.load %arg2[%c91] : memref<98xf32, #tpu.memory_space<smem>>
    %105 = vector.extract_strided_slice %40 {offsets = [0, 96], sizes = [1, 256], strides = [1, 1]} : vector<1x352xf32> to vector<1x256xf32>
    %106 = vector.broadcast %104 : f32 to vector<1x256xf32>
    %107 = arith.mulf %106, %105 : vector<1x256xf32>
    %108 = arith.addf %103, %107 : vector<1x256xf32>
    %109 = arith.addf %99, %108 : vector<1x256xf32>
    %110 = vector.extract_strided_slice %35 {offsets = [1, 0], sizes = [1, 352], strides = [1, 1]} : vector<7x352xf32> to vector<1x352xf32>
    %111 = vector.extract_strided_slice %33 {offsets = [0, 1], sizes = [1, 352], strides = [1, 1]} : vector<1x358xf32> to vector<1x352xf32>
    %112 = arith.mulf %111, %110 : vector<1x352xf32>
    %113 = vector.extract_strided_slice %34 {offsets = [0, 1], sizes = [1, 352], strides = [1, 1]} : vector<1x358xf32> to vector<1x352xf32>
    %114 = arith.mulf %113, %110 : vector<1x352xf32>
    %c1_13 = arith.constant 1 : index
    %115 = memref.load %arg2[%c1_13] : memref<98xf32, #tpu.memory_space<smem>>
    %116 = vector.extract_strided_slice %112 {offsets = [0, 0], sizes = [1, 256], strides = [1, 1]} : vector<1x352xf32> to vector<1x256xf32>
    %117 = vector.broadcast %115 : f32 to vector<1x256xf32>
    %118 = arith.mulf %117, %116 : vector<1x256xf32>
    %c50 = arith.constant 50 : index
    %119 = memref.load %arg2[%c50] : memref<98xf32, #tpu.memory_space<smem>>
    %120 = vector.extract_strided_slice %114 {offsets = [0, 0], sizes = [1, 256], strides = [1, 1]} : vector<1x352xf32> to vector<1x256xf32>
    %121 = vector.broadcast %119 : f32 to vector<1x256xf32>
    %122 = arith.mulf %121, %120 : vector<1x256xf32>
    %123 = arith.addf %118, %122 : vector<1x256xf32>
    %124 = arith.addf %109, %123 : vector<1x256xf32>
    %c8 = arith.constant 8 : index
    %125 = memref.load %arg2[%c8] : memref<98xf32, #tpu.memory_space<smem>>
    %126 = vector.extract_strided_slice %112 {offsets = [0, 16], sizes = [1, 256], strides = [1, 1]} : vector<1x352xf32> to vector<1x256xf32>
    %127 = vector.broadcast %125 : f32 to vector<1x256xf32>
    %128 = arith.mulf %127, %126 : vector<1x256xf32>
    %c57 = arith.constant 57 : index
    %129 = memref.load %arg2[%c57] : memref<98xf32, #tpu.memory_space<smem>>
    %130 = vector.extract_strided_slice %114 {offsets = [0, 16], sizes = [1, 256], strides = [1, 1]} : vector<1x352xf32> to vector<1x256xf32>
    %131 = vector.broadcast %129 : f32 to vector<1x256xf32>
    %132 = arith.mulf %131, %130 : vector<1x256xf32>
    %133 = arith.addf %128, %132 : vector<1x256xf32>
    %134 = arith.addf %124, %133 : vector<1x256xf32>
    %c15 = arith.constant 15 : index
    %135 = memref.load %arg2[%c15] : memref<98xf32, #tpu.memory_space<smem>>
    %136 = vector.extract_strided_slice %112 {offsets = [0, 32], sizes = [1, 256], strides = [1, 1]} : vector<1x352xf32> to vector<1x256xf32>
    %137 = vector.broadcast %135 : f32 to vector<1x256xf32>
    %138 = arith.mulf %137, %136 : vector<1x256xf32>
    %c64 = arith.constant 64 : index
    %139 = memref.load %arg2[%c64] : memref<98xf32, #tpu.memory_space<smem>>
    %140 = vector.extract_strided_slice %114 {offsets = [0, 32], sizes = [1, 256], strides = [1, 1]} : vector<1x352xf32> to vector<1x256xf32>
    %141 = vector.broadcast %139 : f32 to vector<1x256xf32>
    %142 = arith.mulf %141, %140 : vector<1x256xf32>
    %143 = arith.addf %138, %142 : vector<1x256xf32>
    %144 = arith.addf %134, %143 : vector<1x256xf32>
    %c22 = arith.constant 22 : index
    %145 = memref.load %arg2[%c22] : memref<98xf32, #tpu.memory_space<smem>>
    %146 = vector.extract_strided_slice %112 {offsets = [0, 48], sizes = [1, 256], strides = [1, 1]} : vector<1x352xf32> to vector<1x256xf32>
    %147 = vector.broadcast %145 : f32 to vector<1x256xf32>
    %148 = arith.mulf %147, %146 : vector<1x256xf32>
    %c71 = arith.constant 71 : index
    %149 = memref.load %arg2[%c71] : memref<98xf32, #tpu.memory_space<smem>>
    %150 = vector.extract_strided_slice %114 {offsets = [0, 48], sizes = [1, 256], strides = [1, 1]} : vector<1x352xf32> to vector<1x256xf32>
    %151 = vector.broadcast %149 : f32 to vector<1x256xf32>
    %152 = arith.mulf %151, %150 : vector<1x256xf32>
    %153 = arith.addf %148, %152 : vector<1x256xf32>
    %154 = arith.addf %144, %153 : vector<1x256xf32>
    %c29 = arith.constant 29 : index
    %155 = memref.load %arg2[%c29] : memref<98xf32, #tpu.memory_space<smem>>
    %156 = vector.extract_strided_slice %112 {offsets = [0, 64], sizes = [1, 256], strides = [1, 1]} : vector<1x352xf32> to vector<1x256xf32>
    %157 = vector.broadcast %155 : f32 to vector<1x256xf32>
    %158 = arith.mulf %157, %156 : vector<1x256xf32>
    %c78 = arith.constant 78 : index
    %159 = memref.load %arg2[%c78] : memref<98xf32, #tpu.memory_space<smem>>
    %160 = vector.extract_strided_slice %114 {offsets = [0, 64], sizes = [1, 256], strides = [1, 1]} : vector<1x352xf32> to vector<1x256xf32>
    %161 = vector.broadcast %159 : f32 to vector<1x256xf32>
    %162 = arith.mulf %161, %160 : vector<1x256xf32>
    %163 = arith.addf %158, %162 : vector<1x256xf32>
    %164 = arith.addf %154, %163 : vector<1x256xf32>
    %c36 = arith.constant 36 : index
    %165 = memref.load %arg2[%c36] : memref<98xf32, #tpu.memory_space<smem>>
    %166 = vector.extract_strided_slice %112 {offsets = [0, 80], sizes = [1, 256], strides = [1, 1]} : vector<1x352xf32> to vector<1x256xf32>
    %167 = vector.broadcast %165 : f32 to vector<1x256xf32>
    %168 = arith.mulf %167, %166 : vector<1x256xf32>
    %c85 = arith.constant 85 : index
    %169 = memref.load %arg2[%c85] : memref<98xf32, #tpu.memory_space<smem>>
    %170 = vector.extract_strided_slice %114 {offsets = [0, 80], sizes = [1, 256], strides = [1, 1]} : vector<1x352xf32> to vector<1x256xf32>
    %171 = vector.broadcast %169 : f32 to vector<1x256xf32>
    %172 = arith.mulf %171, %170 : vector<1x256xf32>
    %173 = arith.addf %168, %172 : vector<1x256xf32>
    %174 = arith.addf %164, %173 : vector<1x256xf32>
    %c43 = arith.constant 43 : index
    %175 = memref.load %arg2[%c43] : memref<98xf32, #tpu.memory_space<smem>>
    %176 = vector.extract_strided_slice %112 {offsets = [0, 96], sizes = [1, 256], strides = [1, 1]} : vector<1x352xf32> to vector<1x256xf32>
    %177 = vector.broadcast %175 : f32 to vector<1x256xf32>
    %178 = arith.mulf %177, %176 : vector<1x256xf32>
    %c92 = arith.constant 92 : index
    %179 = memref.load %arg2[%c92] : memref<98xf32, #tpu.memory_space<smem>>
    %180 = vector.extract_strided_slice %114 {offsets = [0, 96], sizes = [1, 256], strides = [1, 1]} : vector<1x352xf32> to vector<1x256xf32>
    %181 = vector.broadcast %179 : f32 to vector<1x256xf32>
    %182 = arith.mulf %181, %180 : vector<1x256xf32>
    %183 = arith.addf %178, %182 : vector<1x256xf32>
    %184 = arith.addf %174, %183 : vector<1x256xf32>
    %185 = vector.extract_strided_slice %35 {offsets = [2, 0], sizes = [1, 352], strides = [1, 1]} : vector<7x352xf32> to vector<1x352xf32>
    %186 = vector.extract_strided_slice %33 {offsets = [0, 2], sizes = [1, 352], strides = [1, 1]} : vector<1x358xf32> to vector<1x352xf32>
    %187 = arith.mulf %186, %185 : vector<1x352xf32>
    %188 = vector.extract_strided_slice %34 {offsets = [0, 2], sizes = [1, 352], strides = [1, 1]} : vector<1x358xf32> to vector<1x352xf32>
    %189 = arith.mulf %188, %185 : vector<1x352xf32>
    %c2_14 = arith.constant 2 : index
    %190 = memref.load %arg2[%c2_14] : memref<98xf32, #tpu.memory_space<smem>>
    %191 = vector.extract_strided_slice %187 {offsets = [0, 0], sizes = [1, 256], strides = [1, 1]} : vector<1x352xf32> to vector<1x256xf32>
    %192 = vector.broadcast %190 : f32 to vector<1x256xf32>
    %193 = arith.mulf %192, %191 : vector<1x256xf32>
    %c51 = arith.constant 51 : index
    %194 = memref.load %arg2[%c51] : memref<98xf32, #tpu.memory_space<smem>>
    %195 = vector.extract_strided_slice %189 {offsets = [0, 0], sizes = [1, 256], strides = [1, 1]} : vector<1x352xf32> to vector<1x256xf32>
    %196 = vector.broadcast %194 : f32 to vector<1x256xf32>
    %197 = arith.mulf %196, %195 : vector<1x256xf32>
    %198 = arith.addf %193, %197 : vector<1x256xf32>
    %199 = arith.addf %184, %198 : vector<1x256xf32>
    %c9 = arith.constant 9 : index
    %200 = memref.load %arg2[%c9] : memref<98xf32, #tpu.memory_space<smem>>
    %201 = vector.extract_strided_slice %187 {offsets = [0, 16], sizes = [1, 256], strides = [1, 1]} : vector<1x352xf32> to vector<1x256xf32>
    %202 = vector.broadcast %200 : f32 to vector<1x256xf32>
    %203 = arith.mulf %202, %201 : vector<1x256xf32>
    %c58 = arith.constant 58 : index
    %204 = memref.load %arg2[%c58] : memref<98xf32, #tpu.memory_space<smem>>
    %205 = vector.extract_strided_slice %189 {offsets = [0, 16], sizes = [1, 256], strides = [1, 1]} : vector<1x352xf32> to vector<1x256xf32>
    %206 = vector.broadcast %204 : f32 to vector<1x256xf32>
    %207 = arith.mulf %206, %205 : vector<1x256xf32>
    %208 = arith.addf %203, %207 : vector<1x256xf32>
    %209 = arith.addf %199, %208 : vector<1x256xf32>
    %c16 = arith.constant 16 : index
    %210 = memref.load %arg2[%c16] : memref<98xf32, #tpu.memory_space<smem>>
    %211 = vector.extract_strided_slice %187 {offsets = [0, 32], sizes = [1, 256], strides = [1, 1]} : vector<1x352xf32> to vector<1x256xf32>
    %212 = vector.broadcast %210 : f32 to vector<1x256xf32>
    %213 = arith.mulf %212, %211 : vector<1x256xf32>
    %c65 = arith.constant 65 : index
    %214 = memref.load %arg2[%c65] : memref<98xf32, #tpu.memory_space<smem>>
    %215 = vector.extract_strided_slice %189 {offsets = [0, 32], sizes = [1, 256], strides = [1, 1]} : vector<1x352xf32> to vector<1x256xf32>
    %216 = vector.broadcast %214 : f32 to vector<1x256xf32>
    %217 = arith.mulf %216, %215 : vector<1x256xf32>
    %218 = arith.addf %213, %217 : vector<1x256xf32>
    %219 = arith.addf %209, %218 : vector<1x256xf32>
    %c23 = arith.constant 23 : index
    %220 = memref.load %arg2[%c23] : memref<98xf32, #tpu.memory_space<smem>>
    %221 = vector.extract_strided_slice %187 {offsets = [0, 48], sizes = [1, 256], strides = [1, 1]} : vector<1x352xf32> to vector<1x256xf32>
    %222 = vector.broadcast %220 : f32 to vector<1x256xf32>
    %223 = arith.mulf %222, %221 : vector<1x256xf32>
    %c72 = arith.constant 72 : index
    %224 = memref.load %arg2[%c72] : memref<98xf32, #tpu.memory_space<smem>>
    %225 = vector.extract_strided_slice %189 {offsets = [0, 48], sizes = [1, 256], strides = [1, 1]} : vector<1x352xf32> to vector<1x256xf32>
    %226 = vector.broadcast %224 : f32 to vector<1x256xf32>
    %227 = arith.mulf %226, %225 : vector<1x256xf32>
    %228 = arith.addf %223, %227 : vector<1x256xf32>
    %229 = arith.addf %219, %228 : vector<1x256xf32>
    %c30 = arith.constant 30 : index
    %230 = memref.load %arg2[%c30] : memref<98xf32, #tpu.memory_space<smem>>
    %231 = vector.extract_strided_slice %187 {offsets = [0, 64], sizes = [1, 256], strides = [1, 1]} : vector<1x352xf32> to vector<1x256xf32>
    %232 = vector.broadcast %230 : f32 to vector<1x256xf32>
    %233 = arith.mulf %232, %231 : vector<1x256xf32>
    %c79 = arith.constant 79 : index
    %234 = memref.load %arg2[%c79] : memref<98xf32, #tpu.memory_space<smem>>
    %235 = vector.extract_strided_slice %189 {offsets = [0, 64], sizes = [1, 256], strides = [1, 1]} : vector<1x352xf32> to vector<1x256xf32>
    %236 = vector.broadcast %234 : f32 to vector<1x256xf32>
    %237 = arith.mulf %236, %235 : vector<1x256xf32>
    %238 = arith.addf %233, %237 : vector<1x256xf32>
    %239 = arith.addf %229, %238 : vector<1x256xf32>
    %c37 = arith.constant 37 : index
    %240 = memref.load %arg2[%c37] : memref<98xf32, #tpu.memory_space<smem>>
    %241 = vector.extract_strided_slice %187 {offsets = [0, 80], sizes = [1, 256], strides = [1, 1]} : vector<1x352xf32> to vector<1x256xf32>
    %242 = vector.broadcast %240 : f32 to vector<1x256xf32>
    %243 = arith.mulf %242, %241 : vector<1x256xf32>
    %c86 = arith.constant 86 : index
    %244 = memref.load %arg2[%c86] : memref<98xf32, #tpu.memory_space<smem>>
    %245 = vector.extract_strided_slice %189 {offsets = [0, 80], sizes = [1, 256], strides = [1, 1]} : vector<1x352xf32> to vector<1x256xf32>
    %246 = vector.broadcast %244 : f32 to vector<1x256xf32>
    %247 = arith.mulf %246, %245 : vector<1x256xf32>
    %248 = arith.addf %243, %247 : vector<1x256xf32>
    %249 = arith.addf %239, %248 : vector<1x256xf32>
    %c44 = arith.constant 44 : index
    %250 = memref.load %arg2[%c44] : memref<98xf32, #tpu.memory_space<smem>>
    %251 = vector.extract_strided_slice %187 {offsets = [0, 96], sizes = [1, 256], strides = [1, 1]} : vector<1x352xf32> to vector<1x256xf32>
    %252 = vector.broadcast %250 : f32 to vector<1x256xf32>
    %253 = arith.mulf %252, %251 : vector<1x256xf32>
    %c93 = arith.constant 93 : index
    %254 = memref.load %arg2[%c93] : memref<98xf32, #tpu.memory_space<smem>>
    %255 = vector.extract_strided_slice %189 {offsets = [0, 96], sizes = [1, 256], strides = [1, 1]} : vector<1x352xf32> to vector<1x256xf32>
    %256 = vector.broadcast %254 : f32 to vector<1x256xf32>
    %257 = arith.mulf %256, %255 : vector<1x256xf32>
    %258 = arith.addf %253, %257 : vector<1x256xf32>
    %259 = arith.addf %249, %258 : vector<1x256xf32>
    %260 = vector.extract_strided_slice %35 {offsets = [3, 0], sizes = [1, 352], strides = [1, 1]} : vector<7x352xf32> to vector<1x352xf32>
    %261 = vector.extract_strided_slice %33 {offsets = [0, 3], sizes = [1, 352], strides = [1, 1]} : vector<1x358xf32> to vector<1x352xf32>
    %262 = arith.mulf %261, %260 : vector<1x352xf32>
    %263 = vector.extract_strided_slice %34 {offsets = [0, 3], sizes = [1, 352], strides = [1, 1]} : vector<1x358xf32> to vector<1x352xf32>
    %264 = arith.mulf %263, %260 : vector<1x352xf32>
    %c3 = arith.constant 3 : index
    %265 = memref.load %arg2[%c3] : memref<98xf32, #tpu.memory_space<smem>>
    %266 = vector.extract_strided_slice %262 {offsets = [0, 0], sizes = [1, 256], strides = [1, 1]} : vector<1x352xf32> to vector<1x256xf32>
    %267 = vector.broadcast %265 : f32 to vector<1x256xf32>
    %268 = arith.mulf %267, %266 : vector<1x256xf32>
    %c52 = arith.constant 52 : index
    %269 = memref.load %arg2[%c52] : memref<98xf32, #tpu.memory_space<smem>>
    %270 = vector.extract_strided_slice %264 {offsets = [0, 0], sizes = [1, 256], strides = [1, 1]} : vector<1x352xf32> to vector<1x256xf32>
    %271 = vector.broadcast %269 : f32 to vector<1x256xf32>
    %272 = arith.mulf %271, %270 : vector<1x256xf32>
    %273 = arith.addf %268, %272 : vector<1x256xf32>
    %274 = arith.addf %259, %273 : vector<1x256xf32>
    %c10 = arith.constant 10 : index
    %275 = memref.load %arg2[%c10] : memref<98xf32, #tpu.memory_space<smem>>
    %276 = vector.extract_strided_slice %262 {offsets = [0, 16], sizes = [1, 256], strides = [1, 1]} : vector<1x352xf32> to vector<1x256xf32>
    %277 = vector.broadcast %275 : f32 to vector<1x256xf32>
    %278 = arith.mulf %277, %276 : vector<1x256xf32>
    %c59 = arith.constant 59 : index
    %279 = memref.load %arg2[%c59] : memref<98xf32, #tpu.memory_space<smem>>
    %280 = vector.extract_strided_slice %264 {offsets = [0, 16], sizes = [1, 256], strides = [1, 1]} : vector<1x352xf32> to vector<1x256xf32>
    %281 = vector.broadcast %279 : f32 to vector<1x256xf32>
    %282 = arith.mulf %281, %280 : vector<1x256xf32>
    %283 = arith.addf %278, %282 : vector<1x256xf32>
    %284 = arith.addf %274, %283 : vector<1x256xf32>
    %c17 = arith.constant 17 : index
    %285 = memref.load %arg2[%c17] : memref<98xf32, #tpu.memory_space<smem>>
    %286 = vector.extract_strided_slice %262 {offsets = [0, 32], sizes = [1, 256], strides = [1, 1]} : vector<1x352xf32> to vector<1x256xf32>
    %287 = vector.broadcast %285 : f32 to vector<1x256xf32>
    %288 = arith.mulf %287, %286 : vector<1x256xf32>
    %c66 = arith.constant 66 : index
    %289 = memref.load %arg2[%c66] : memref<98xf32, #tpu.memory_space<smem>>
    %290 = vector.extract_strided_slice %264 {offsets = [0, 32], sizes = [1, 256], strides = [1, 1]} : vector<1x352xf32> to vector<1x256xf32>
    %291 = vector.broadcast %289 : f32 to vector<1x256xf32>
    %292 = arith.mulf %291, %290 : vector<1x256xf32>
    %293 = arith.addf %288, %292 : vector<1x256xf32>
    %294 = arith.addf %284, %293 : vector<1x256xf32>
    %c24 = arith.constant 24 : index
    %295 = memref.load %arg2[%c24] : memref<98xf32, #tpu.memory_space<smem>>
    %296 = vector.extract_strided_slice %262 {offsets = [0, 48], sizes = [1, 256], strides = [1, 1]} : vector<1x352xf32> to vector<1x256xf32>
    %297 = vector.broadcast %295 : f32 to vector<1x256xf32>
    %298 = arith.mulf %297, %296 : vector<1x256xf32>
    %c73 = arith.constant 73 : index
    %299 = memref.load %arg2[%c73] : memref<98xf32, #tpu.memory_space<smem>>
    %300 = vector.extract_strided_slice %264 {offsets = [0, 48], sizes = [1, 256], strides = [1, 1]} : vector<1x352xf32> to vector<1x256xf32>
    %301 = vector.broadcast %299 : f32 to vector<1x256xf32>
    %302 = arith.mulf %301, %300 : vector<1x256xf32>
    %303 = arith.addf %298, %302 : vector<1x256xf32>
    %304 = arith.addf %294, %303 : vector<1x256xf32>
    %c31 = arith.constant 31 : index
    %305 = memref.load %arg2[%c31] : memref<98xf32, #tpu.memory_space<smem>>
    %306 = vector.extract_strided_slice %262 {offsets = [0, 64], sizes = [1, 256], strides = [1, 1]} : vector<1x352xf32> to vector<1x256xf32>
    %307 = vector.broadcast %305 : f32 to vector<1x256xf32>
    %308 = arith.mulf %307, %306 : vector<1x256xf32>
    %c80 = arith.constant 80 : index
    %309 = memref.load %arg2[%c80] : memref<98xf32, #tpu.memory_space<smem>>
    %310 = vector.extract_strided_slice %264 {offsets = [0, 64], sizes = [1, 256], strides = [1, 1]} : vector<1x352xf32> to vector<1x256xf32>
    %311 = vector.broadcast %309 : f32 to vector<1x256xf32>
    %312 = arith.mulf %311, %310 : vector<1x256xf32>
    %313 = arith.addf %308, %312 : vector<1x256xf32>
    %314 = arith.addf %304, %313 : vector<1x256xf32>
    %c38 = arith.constant 38 : index
    %315 = memref.load %arg2[%c38] : memref<98xf32, #tpu.memory_space<smem>>
    %316 = vector.extract_strided_slice %262 {offsets = [0, 80], sizes = [1, 256], strides = [1, 1]} : vector<1x352xf32> to vector<1x256xf32>
    %317 = vector.broadcast %315 : f32 to vector<1x256xf32>
    %318 = arith.mulf %317, %316 : vector<1x256xf32>
    %c87 = arith.constant 87 : index
    %319 = memref.load %arg2[%c87] : memref<98xf32, #tpu.memory_space<smem>>
    %320 = vector.extract_strided_slice %264 {offsets = [0, 80], sizes = [1, 256], strides = [1, 1]} : vector<1x352xf32> to vector<1x256xf32>
    %321 = vector.broadcast %319 : f32 to vector<1x256xf32>
    %322 = arith.mulf %321, %320 : vector<1x256xf32>
    %323 = arith.addf %318, %322 : vector<1x256xf32>
    %324 = arith.addf %314, %323 : vector<1x256xf32>
    %c45 = arith.constant 45 : index
    %325 = memref.load %arg2[%c45] : memref<98xf32, #tpu.memory_space<smem>>
    %326 = vector.extract_strided_slice %262 {offsets = [0, 96], sizes = [1, 256], strides = [1, 1]} : vector<1x352xf32> to vector<1x256xf32>
    %327 = vector.broadcast %325 : f32 to vector<1x256xf32>
    %328 = arith.mulf %327, %326 : vector<1x256xf32>
    %c94 = arith.constant 94 : index
    %329 = memref.load %arg2[%c94] : memref<98xf32, #tpu.memory_space<smem>>
    %330 = vector.extract_strided_slice %264 {offsets = [0, 96], sizes = [1, 256], strides = [1, 1]} : vector<1x352xf32> to vector<1x256xf32>
    %331 = vector.broadcast %329 : f32 to vector<1x256xf32>
    %332 = arith.mulf %331, %330 : vector<1x256xf32>
    %333 = arith.addf %328, %332 : vector<1x256xf32>
    %334 = arith.addf %324, %333 : vector<1x256xf32>
    %335 = vector.extract_strided_slice %35 {offsets = [4, 0], sizes = [1, 352], strides = [1, 1]} : vector<7x352xf32> to vector<1x352xf32>
    %336 = vector.extract_strided_slice %33 {offsets = [0, 4], sizes = [1, 352], strides = [1, 1]} : vector<1x358xf32> to vector<1x352xf32>
    %337 = arith.mulf %336, %335 : vector<1x352xf32>
    %338 = vector.extract_strided_slice %34 {offsets = [0, 4], sizes = [1, 352], strides = [1, 1]} : vector<1x358xf32> to vector<1x352xf32>
    %339 = arith.mulf %338, %335 : vector<1x352xf32>
    %c4 = arith.constant 4 : index
    %340 = memref.load %arg2[%c4] : memref<98xf32, #tpu.memory_space<smem>>
    %341 = vector.extract_strided_slice %337 {offsets = [0, 0], sizes = [1, 256], strides = [1, 1]} : vector<1x352xf32> to vector<1x256xf32>
    %342 = vector.broadcast %340 : f32 to vector<1x256xf32>
    %343 = arith.mulf %342, %341 : vector<1x256xf32>
    %c53 = arith.constant 53 : index
    %344 = memref.load %arg2[%c53] : memref<98xf32, #tpu.memory_space<smem>>
    %345 = vector.extract_strided_slice %339 {offsets = [0, 0], sizes = [1, 256], strides = [1, 1]} : vector<1x352xf32> to vector<1x256xf32>
    %346 = vector.broadcast %344 : f32 to vector<1x256xf32>
    %347 = arith.mulf %346, %345 : vector<1x256xf32>
    %348 = arith.addf %343, %347 : vector<1x256xf32>
    %349 = arith.addf %334, %348 : vector<1x256xf32>
    %c11 = arith.constant 11 : index
    %350 = memref.load %arg2[%c11] : memref<98xf32, #tpu.memory_space<smem>>
    %351 = vector.extract_strided_slice %337 {offsets = [0, 16], sizes = [1, 256], strides = [1, 1]} : vector<1x352xf32> to vector<1x256xf32>
    %352 = vector.broadcast %350 : f32 to vector<1x256xf32>
    %353 = arith.mulf %352, %351 : vector<1x256xf32>
    %c60 = arith.constant 60 : index
    %354 = memref.load %arg2[%c60] : memref<98xf32, #tpu.memory_space<smem>>
    %355 = vector.extract_strided_slice %339 {offsets = [0, 16], sizes = [1, 256], strides = [1, 1]} : vector<1x352xf32> to vector<1x256xf32>
    %356 = vector.broadcast %354 : f32 to vector<1x256xf32>
    %357 = arith.mulf %356, %355 : vector<1x256xf32>
    %358 = arith.addf %353, %357 : vector<1x256xf32>
    %359 = arith.addf %349, %358 : vector<1x256xf32>
    %c18 = arith.constant 18 : index
    %360 = memref.load %arg2[%c18] : memref<98xf32, #tpu.memory_space<smem>>
    %361 = vector.extract_strided_slice %337 {offsets = [0, 32], sizes = [1, 256], strides = [1, 1]} : vector<1x352xf32> to vector<1x256xf32>
    %362 = vector.broadcast %360 : f32 to vector<1x256xf32>
    %363 = arith.mulf %362, %361 : vector<1x256xf32>
    %c67 = arith.constant 67 : index
    %364 = memref.load %arg2[%c67] : memref<98xf32, #tpu.memory_space<smem>>
    %365 = vector.extract_strided_slice %339 {offsets = [0, 32], sizes = [1, 256], strides = [1, 1]} : vector<1x352xf32> to vector<1x256xf32>
    %366 = vector.broadcast %364 : f32 to vector<1x256xf32>
    %367 = arith.mulf %366, %365 : vector<1x256xf32>
    %368 = arith.addf %363, %367 : vector<1x256xf32>
    %369 = arith.addf %359, %368 : vector<1x256xf32>
    %c25 = arith.constant 25 : index
    %370 = memref.load %arg2[%c25] : memref<98xf32, #tpu.memory_space<smem>>
    %371 = vector.extract_strided_slice %337 {offsets = [0, 48], sizes = [1, 256], strides = [1, 1]} : vector<1x352xf32> to vector<1x256xf32>
    %372 = vector.broadcast %370 : f32 to vector<1x256xf32>
    %373 = arith.mulf %372, %371 : vector<1x256xf32>
    %c74 = arith.constant 74 : index
    %374 = memref.load %arg2[%c74] : memref<98xf32, #tpu.memory_space<smem>>
    %375 = vector.extract_strided_slice %339 {offsets = [0, 48], sizes = [1, 256], strides = [1, 1]} : vector<1x352xf32> to vector<1x256xf32>
    %376 = vector.broadcast %374 : f32 to vector<1x256xf32>
    %377 = arith.mulf %376, %375 : vector<1x256xf32>
    %378 = arith.addf %373, %377 : vector<1x256xf32>
    %379 = arith.addf %369, %378 : vector<1x256xf32>
    %c32 = arith.constant 32 : index
    %380 = memref.load %arg2[%c32] : memref<98xf32, #tpu.memory_space<smem>>
    %381 = vector.extract_strided_slice %337 {offsets = [0, 64], sizes = [1, 256], strides = [1, 1]} : vector<1x352xf32> to vector<1x256xf32>
    %382 = vector.broadcast %380 : f32 to vector<1x256xf32>
    %383 = arith.mulf %382, %381 : vector<1x256xf32>
    %c81 = arith.constant 81 : index
    %384 = memref.load %arg2[%c81] : memref<98xf32, #tpu.memory_space<smem>>
    %385 = vector.extract_strided_slice %339 {offsets = [0, 64], sizes = [1, 256], strides = [1, 1]} : vector<1x352xf32> to vector<1x256xf32>
    %386 = vector.broadcast %384 : f32 to vector<1x256xf32>
    %387 = arith.mulf %386, %385 : vector<1x256xf32>
    %388 = arith.addf %383, %387 : vector<1x256xf32>
    %389 = arith.addf %379, %388 : vector<1x256xf32>
    %c39 = arith.constant 39 : index
    %390 = memref.load %arg2[%c39] : memref<98xf32, #tpu.memory_space<smem>>
    %391 = vector.extract_strided_slice %337 {offsets = [0, 80], sizes = [1, 256], strides = [1, 1]} : vector<1x352xf32> to vector<1x256xf32>
    %392 = vector.broadcast %390 : f32 to vector<1x256xf32>
    %393 = arith.mulf %392, %391 : vector<1x256xf32>
    %c88 = arith.constant 88 : index
    %394 = memref.load %arg2[%c88] : memref<98xf32, #tpu.memory_space<smem>>
    %395 = vector.extract_strided_slice %339 {offsets = [0, 80], sizes = [1, 256], strides = [1, 1]} : vector<1x352xf32> to vector<1x256xf32>
    %396 = vector.broadcast %394 : f32 to vector<1x256xf32>
    %397 = arith.mulf %396, %395 : vector<1x256xf32>
    %398 = arith.addf %393, %397 : vector<1x256xf32>
    %399 = arith.addf %389, %398 : vector<1x256xf32>
    %c46 = arith.constant 46 : index
    %400 = memref.load %arg2[%c46] : memref<98xf32, #tpu.memory_space<smem>>
    %401 = vector.extract_strided_slice %337 {offsets = [0, 96], sizes = [1, 256], strides = [1, 1]} : vector<1x352xf32> to vector<1x256xf32>
    %402 = vector.broadcast %400 : f32 to vector<1x256xf32>
    %403 = arith.mulf %402, %401 : vector<1x256xf32>
    %c95 = arith.constant 95 : index
    %404 = memref.load %arg2[%c95] : memref<98xf32, #tpu.memory_space<smem>>
    %405 = vector.extract_strided_slice %339 {offsets = [0, 96], sizes = [1, 256], strides = [1, 1]} : vector<1x352xf32> to vector<1x256xf32>
    %406 = vector.broadcast %404 : f32 to vector<1x256xf32>
    %407 = arith.mulf %406, %405 : vector<1x256xf32>
    %408 = arith.addf %403, %407 : vector<1x256xf32>
    %409 = arith.addf %399, %408 : vector<1x256xf32>
    %410 = vector.extract_strided_slice %35 {offsets = [5, 0], sizes = [1, 352], strides = [1, 1]} : vector<7x352xf32> to vector<1x352xf32>
    %411 = vector.extract_strided_slice %33 {offsets = [0, 5], sizes = [1, 352], strides = [1, 1]} : vector<1x358xf32> to vector<1x352xf32>
    %412 = arith.mulf %411, %410 : vector<1x352xf32>
    %413 = vector.extract_strided_slice %34 {offsets = [0, 5], sizes = [1, 352], strides = [1, 1]} : vector<1x358xf32> to vector<1x352xf32>
    %414 = arith.mulf %413, %410 : vector<1x352xf32>
    %c5 = arith.constant 5 : index
    %415 = memref.load %arg2[%c5] : memref<98xf32, #tpu.memory_space<smem>>
    %416 = vector.extract_strided_slice %412 {offsets = [0, 0], sizes = [1, 256], strides = [1, 1]} : vector<1x352xf32> to vector<1x256xf32>
    %417 = vector.broadcast %415 : f32 to vector<1x256xf32>
    %418 = arith.mulf %417, %416 : vector<1x256xf32>
    %c54 = arith.constant 54 : index
    %419 = memref.load %arg2[%c54] : memref<98xf32, #tpu.memory_space<smem>>
    %420 = vector.extract_strided_slice %414 {offsets = [0, 0], sizes = [1, 256], strides = [1, 1]} : vector<1x352xf32> to vector<1x256xf32>
    %421 = vector.broadcast %419 : f32 to vector<1x256xf32>
    %422 = arith.mulf %421, %420 : vector<1x256xf32>
    %423 = arith.addf %418, %422 : vector<1x256xf32>
    %424 = arith.addf %409, %423 : vector<1x256xf32>
    %c12 = arith.constant 12 : index
    %425 = memref.load %arg2[%c12] : memref<98xf32, #tpu.memory_space<smem>>
    %426 = vector.extract_strided_slice %412 {offsets = [0, 16], sizes = [1, 256], strides = [1, 1]} : vector<1x352xf32> to vector<1x256xf32>
    %427 = vector.broadcast %425 : f32 to vector<1x256xf32>
    %428 = arith.mulf %427, %426 : vector<1x256xf32>
    %c61 = arith.constant 61 : index
    %429 = memref.load %arg2[%c61] : memref<98xf32, #tpu.memory_space<smem>>
    %430 = vector.extract_strided_slice %414 {offsets = [0, 16], sizes = [1, 256], strides = [1, 1]} : vector<1x352xf32> to vector<1x256xf32>
    %431 = vector.broadcast %429 : f32 to vector<1x256xf32>
    %432 = arith.mulf %431, %430 : vector<1x256xf32>
    %433 = arith.addf %428, %432 : vector<1x256xf32>
    %434 = arith.addf %424, %433 : vector<1x256xf32>
    %c19 = arith.constant 19 : index
    %435 = memref.load %arg2[%c19] : memref<98xf32, #tpu.memory_space<smem>>
    %436 = vector.extract_strided_slice %412 {offsets = [0, 32], sizes = [1, 256], strides = [1, 1]} : vector<1x352xf32> to vector<1x256xf32>
    %437 = vector.broadcast %435 : f32 to vector<1x256xf32>
    %438 = arith.mulf %437, %436 : vector<1x256xf32>
    %c68 = arith.constant 68 : index
    %439 = memref.load %arg2[%c68] : memref<98xf32, #tpu.memory_space<smem>>
    %440 = vector.extract_strided_slice %414 {offsets = [0, 32], sizes = [1, 256], strides = [1, 1]} : vector<1x352xf32> to vector<1x256xf32>
    %441 = vector.broadcast %439 : f32 to vector<1x256xf32>
    %442 = arith.mulf %441, %440 : vector<1x256xf32>
    %443 = arith.addf %438, %442 : vector<1x256xf32>
    %444 = arith.addf %434, %443 : vector<1x256xf32>
    %c26 = arith.constant 26 : index
    %445 = memref.load %arg2[%c26] : memref<98xf32, #tpu.memory_space<smem>>
    %446 = vector.extract_strided_slice %412 {offsets = [0, 48], sizes = [1, 256], strides = [1, 1]} : vector<1x352xf32> to vector<1x256xf32>
    %447 = vector.broadcast %445 : f32 to vector<1x256xf32>
    %448 = arith.mulf %447, %446 : vector<1x256xf32>
    %c75 = arith.constant 75 : index
    %449 = memref.load %arg2[%c75] : memref<98xf32, #tpu.memory_space<smem>>
    %450 = vector.extract_strided_slice %414 {offsets = [0, 48], sizes = [1, 256], strides = [1, 1]} : vector<1x352xf32> to vector<1x256xf32>
    %451 = vector.broadcast %449 : f32 to vector<1x256xf32>
    %452 = arith.mulf %451, %450 : vector<1x256xf32>
    %453 = arith.addf %448, %452 : vector<1x256xf32>
    %454 = arith.addf %444, %453 : vector<1x256xf32>
    %c33 = arith.constant 33 : index
    %455 = memref.load %arg2[%c33] : memref<98xf32, #tpu.memory_space<smem>>
    %456 = vector.extract_strided_slice %412 {offsets = [0, 64], sizes = [1, 256], strides = [1, 1]} : vector<1x352xf32> to vector<1x256xf32>
    %457 = vector.broadcast %455 : f32 to vector<1x256xf32>
    %458 = arith.mulf %457, %456 : vector<1x256xf32>
    %c82 = arith.constant 82 : index
    %459 = memref.load %arg2[%c82] : memref<98xf32, #tpu.memory_space<smem>>
    %460 = vector.extract_strided_slice %414 {offsets = [0, 64], sizes = [1, 256], strides = [1, 1]} : vector<1x352xf32> to vector<1x256xf32>
    %461 = vector.broadcast %459 : f32 to vector<1x256xf32>
    %462 = arith.mulf %461, %460 : vector<1x256xf32>
    %463 = arith.addf %458, %462 : vector<1x256xf32>
    %464 = arith.addf %454, %463 : vector<1x256xf32>
    %c40 = arith.constant 40 : index
    %465 = memref.load %arg2[%c40] : memref<98xf32, #tpu.memory_space<smem>>
    %466 = vector.extract_strided_slice %412 {offsets = [0, 80], sizes = [1, 256], strides = [1, 1]} : vector<1x352xf32> to vector<1x256xf32>
    %467 = vector.broadcast %465 : f32 to vector<1x256xf32>
    %468 = arith.mulf %467, %466 : vector<1x256xf32>
    %c89 = arith.constant 89 : index
    %469 = memref.load %arg2[%c89] : memref<98xf32, #tpu.memory_space<smem>>
    %470 = vector.extract_strided_slice %414 {offsets = [0, 80], sizes = [1, 256], strides = [1, 1]} : vector<1x352xf32> to vector<1x256xf32>
    %471 = vector.broadcast %469 : f32 to vector<1x256xf32>
    %472 = arith.mulf %471, %470 : vector<1x256xf32>
    %473 = arith.addf %468, %472 : vector<1x256xf32>
    %474 = arith.addf %464, %473 : vector<1x256xf32>
    %c47 = arith.constant 47 : index
    %475 = memref.load %arg2[%c47] : memref<98xf32, #tpu.memory_space<smem>>
    %476 = vector.extract_strided_slice %412 {offsets = [0, 96], sizes = [1, 256], strides = [1, 1]} : vector<1x352xf32> to vector<1x256xf32>
    %477 = vector.broadcast %475 : f32 to vector<1x256xf32>
    %478 = arith.mulf %477, %476 : vector<1x256xf32>
    %c96 = arith.constant 96 : index
    %479 = memref.load %arg2[%c96] : memref<98xf32, #tpu.memory_space<smem>>
    %480 = vector.extract_strided_slice %414 {offsets = [0, 96], sizes = [1, 256], strides = [1, 1]} : vector<1x352xf32> to vector<1x256xf32>
    %481 = vector.broadcast %479 : f32 to vector<1x256xf32>
    %482 = arith.mulf %481, %480 : vector<1x256xf32>
    %483 = arith.addf %478, %482 : vector<1x256xf32>
    %484 = arith.addf %474, %483 : vector<1x256xf32>
    %485 = vector.extract_strided_slice %35 {offsets = [6, 0], sizes = [1, 352], strides = [1, 1]} : vector<7x352xf32> to vector<1x352xf32>
    %486 = vector.extract_strided_slice %33 {offsets = [0, 6], sizes = [1, 352], strides = [1, 1]} : vector<1x358xf32> to vector<1x352xf32>
    %487 = arith.mulf %486, %485 : vector<1x352xf32>
    %488 = vector.extract_strided_slice %34 {offsets = [0, 6], sizes = [1, 352], strides = [1, 1]} : vector<1x358xf32> to vector<1x352xf32>
    %489 = arith.mulf %488, %485 : vector<1x352xf32>
    %c6 = arith.constant 6 : index
    %490 = memref.load %arg2[%c6] : memref<98xf32, #tpu.memory_space<smem>>
    %491 = vector.extract_strided_slice %487 {offsets = [0, 0], sizes = [1, 256], strides = [1, 1]} : vector<1x352xf32> to vector<1x256xf32>
    %492 = vector.broadcast %490 : f32 to vector<1x256xf32>
    %493 = arith.mulf %492, %491 : vector<1x256xf32>
    %c55 = arith.constant 55 : index
    %494 = memref.load %arg2[%c55] : memref<98xf32, #tpu.memory_space<smem>>
    %495 = vector.extract_strided_slice %489 {offsets = [0, 0], sizes = [1, 256], strides = [1, 1]} : vector<1x352xf32> to vector<1x256xf32>
    %496 = vector.broadcast %494 : f32 to vector<1x256xf32>
    %497 = arith.mulf %496, %495 : vector<1x256xf32>
    %498 = arith.addf %493, %497 : vector<1x256xf32>
    %499 = arith.addf %484, %498 : vector<1x256xf32>
    %c13 = arith.constant 13 : index
    %500 = memref.load %arg2[%c13] : memref<98xf32, #tpu.memory_space<smem>>
    %501 = vector.extract_strided_slice %487 {offsets = [0, 16], sizes = [1, 256], strides = [1, 1]} : vector<1x352xf32> to vector<1x256xf32>
    %502 = vector.broadcast %500 : f32 to vector<1x256xf32>
    %503 = arith.mulf %502, %501 : vector<1x256xf32>
    %c62 = arith.constant 62 : index
    %504 = memref.load %arg2[%c62] : memref<98xf32, #tpu.memory_space<smem>>
    %505 = vector.extract_strided_slice %489 {offsets = [0, 16], sizes = [1, 256], strides = [1, 1]} : vector<1x352xf32> to vector<1x256xf32>
    %506 = vector.broadcast %504 : f32 to vector<1x256xf32>
    %507 = arith.mulf %506, %505 : vector<1x256xf32>
    %508 = arith.addf %503, %507 : vector<1x256xf32>
    %509 = arith.addf %499, %508 : vector<1x256xf32>
    %c20 = arith.constant 20 : index
    %510 = memref.load %arg2[%c20] : memref<98xf32, #tpu.memory_space<smem>>
    %511 = vector.extract_strided_slice %487 {offsets = [0, 32], sizes = [1, 256], strides = [1, 1]} : vector<1x352xf32> to vector<1x256xf32>
    %512 = vector.broadcast %510 : f32 to vector<1x256xf32>
    %513 = arith.mulf %512, %511 : vector<1x256xf32>
    %c69 = arith.constant 69 : index
    %514 = memref.load %arg2[%c69] : memref<98xf32, #tpu.memory_space<smem>>
    %515 = vector.extract_strided_slice %489 {offsets = [0, 32], sizes = [1, 256], strides = [1, 1]} : vector<1x352xf32> to vector<1x256xf32>
    %516 = vector.broadcast %514 : f32 to vector<1x256xf32>
    %517 = arith.mulf %516, %515 : vector<1x256xf32>
    %518 = arith.addf %513, %517 : vector<1x256xf32>
    %519 = arith.addf %509, %518 : vector<1x256xf32>
    %c27 = arith.constant 27 : index
    %520 = memref.load %arg2[%c27] : memref<98xf32, #tpu.memory_space<smem>>
    %521 = vector.extract_strided_slice %487 {offsets = [0, 48], sizes = [1, 256], strides = [1, 1]} : vector<1x352xf32> to vector<1x256xf32>
    %522 = vector.broadcast %520 : f32 to vector<1x256xf32>
    %523 = arith.mulf %522, %521 : vector<1x256xf32>
    %c76 = arith.constant 76 : index
    %524 = memref.load %arg2[%c76] : memref<98xf32, #tpu.memory_space<smem>>
    %525 = vector.extract_strided_slice %489 {offsets = [0, 48], sizes = [1, 256], strides = [1, 1]} : vector<1x352xf32> to vector<1x256xf32>
    %526 = vector.broadcast %524 : f32 to vector<1x256xf32>
    %527 = arith.mulf %526, %525 : vector<1x256xf32>
    %528 = arith.addf %523, %527 : vector<1x256xf32>
    %529 = arith.addf %519, %528 : vector<1x256xf32>
    %c34 = arith.constant 34 : index
    %530 = memref.load %arg2[%c34] : memref<98xf32, #tpu.memory_space<smem>>
    %531 = vector.extract_strided_slice %487 {offsets = [0, 64], sizes = [1, 256], strides = [1, 1]} : vector<1x352xf32> to vector<1x256xf32>
    %532 = vector.broadcast %530 : f32 to vector<1x256xf32>
    %533 = arith.mulf %532, %531 : vector<1x256xf32>
    %c83 = arith.constant 83 : index
    %534 = memref.load %arg2[%c83] : memref<98xf32, #tpu.memory_space<smem>>
    %535 = vector.extract_strided_slice %489 {offsets = [0, 64], sizes = [1, 256], strides = [1, 1]} : vector<1x352xf32> to vector<1x256xf32>
    %536 = vector.broadcast %534 : f32 to vector<1x256xf32>
    %537 = arith.mulf %536, %535 : vector<1x256xf32>
    %538 = arith.addf %533, %537 : vector<1x256xf32>
    %539 = arith.addf %529, %538 : vector<1x256xf32>
    %c41 = arith.constant 41 : index
    %540 = memref.load %arg2[%c41] : memref<98xf32, #tpu.memory_space<smem>>
    %541 = vector.extract_strided_slice %487 {offsets = [0, 80], sizes = [1, 256], strides = [1, 1]} : vector<1x352xf32> to vector<1x256xf32>
    %542 = vector.broadcast %540 : f32 to vector<1x256xf32>
    %543 = arith.mulf %542, %541 : vector<1x256xf32>
    %c90 = arith.constant 90 : index
    %544 = memref.load %arg2[%c90] : memref<98xf32, #tpu.memory_space<smem>>
    %545 = vector.extract_strided_slice %489 {offsets = [0, 80], sizes = [1, 256], strides = [1, 1]} : vector<1x352xf32> to vector<1x256xf32>
    %546 = vector.broadcast %544 : f32 to vector<1x256xf32>
    %547 = arith.mulf %546, %545 : vector<1x256xf32>
    %548 = arith.addf %543, %547 : vector<1x256xf32>
    %549 = arith.addf %539, %548 : vector<1x256xf32>
    %c48 = arith.constant 48 : index
    %550 = memref.load %arg2[%c48] : memref<98xf32, #tpu.memory_space<smem>>
    %551 = vector.extract_strided_slice %487 {offsets = [0, 96], sizes = [1, 256], strides = [1, 1]} : vector<1x352xf32> to vector<1x256xf32>
    %552 = vector.broadcast %550 : f32 to vector<1x256xf32>
    %553 = arith.mulf %552, %551 : vector<1x256xf32>
    %c97 = arith.constant 97 : index
    %554 = memref.load %arg2[%c97] : memref<98xf32, #tpu.memory_space<smem>>
    %555 = vector.extract_strided_slice %489 {offsets = [0, 96], sizes = [1, 256], strides = [1, 1]} : vector<1x352xf32> to vector<1x256xf32>
    %556 = vector.broadcast %554 : f32 to vector<1x256xf32>
    %557 = arith.mulf %556, %555 : vector<1x256xf32>
    %558 = arith.addf %553, %557 : vector<1x256xf32>
    %559 = arith.addf %549, %558 : vector<1x256xf32>
    %c0_15 = arith.constant 0 : index
    %560 = memref.load %arg3[%c0_15] : memref<1xf32, #tpu.memory_space<smem>>
    %561 = vector.broadcast %560 : f32 to vector<1x256xf32>
    %562 = arith.addf %559, %561 : vector<1x256xf32>
    %563 = arith.negf %562 : vector<1x256xf32>
    %564 = math.exp %563 : vector<1x256xf32>
    %cst_16 = arith.constant 1.000000e+00 : f32
    %565 = vector.broadcast %cst_16 : f32 to vector<1x256xf32>
    %566 = arith.addf %565, %564 : vector<1x256xf32>
    %567 = arith.divf %565, %566 : vector<1x256xf32>
    %568 = vector.shape_cast %567 : vector<1x256xf32> to vector<1x1x256xf32>
    %569 = vector.broadcast %568 : vector<1x1x256xf32> to vector<1x4x256xf32>
    %570 = arith.mulf %27, %569 : vector<1x4x256xf32>
    %c0_17 = arith.constant 0 : index
    %c0_18 = arith.constant 0 : index
    %c0_19 = arith.constant 0 : index
    %571 = vector.load %arg6[%c0_17, %c0_18, %c0_19] : memref<1x4x256xf32, #tpu.memory_space<vmem>>, vector<1x4x256xf32>
    tpu.vector_store %arg6[%c0_17, %c0_18, %c0_19], %570 {strides = array<i32>} : memref<1x4x256xf32, #tpu.memory_space<vmem>>, vector<1x4x256xf32>,
    return
  }
  func.func @transform_0(%arg0: i32) -> i32 {
    %c0_i32 = arith.constant 0 : i32
    %c0_i32_0 = arith.constant 0 : i32
    return %c0_i32 : i32
  }
  func.func @transform_1(%arg0: i32) -> i32 {
    %c0_i32 = arith.constant 0 : i32
    %c0_i32_0 = arith.constant 0 : i32
    return %c0_i32 : i32
  }
  func.func @transform_2(%arg0: i32) -> i32 {
    %c0_i32 = arith.constant 0 : i32
    %c0_i32_0 = arith.constant 0 : i32
    return %c0_i32 : i32
  }
  func.func @transform_3(%arg0: i32) -> (i32, i32) {
    %c0_i32 = arith.constant 0 : i32
    %c0_i32_0 = arith.constant 0 : i32
    %c0_i32_1 = arith.constant 0 : i32
    return %c0_i32, %c0_i32_0 : i32, i32
  }
  func.func @transform_4(%arg0: i32) -> (i32, i32, i32) {
    %c0_i32 = arith.constant 0 : i32
    %c0_i32_0 = arith.constant 0 : i32
    %c0_i32_1 = arith.constant 0 : i32
    return %arg0, %c0_i32, %c0_i32_0 : i32, i32, i32
  }
  func.func @transform_5(%arg0: i32) -> (i32, i32, i32) {
    %c0_i32 = arith.constant 0 : i32
    %c0_i32_0 = arith.constant 0 : i32
    %c0_i32_1 = arith.constant 0 : i32
    return %arg0, %c0_i32, %c0_i32_0 : i32, i32, i32
  }
}

</mosaic_0001>

<llo_original>
// kernel: tpu_custom_call.1
$region0: #{tpu_custom_call.1}
  #allocation0 [shape = 'u32[]', space=smem, size = 0x4, offset = 0x4, fixed_abs, tag = 'smem constant byte address 0x4 - core index']
  #allocation1 [shape = 'u32[72,128]{1,0:T(1,128)}', space=vmem, size = 0x9000, scoped, tag = 'internal scratch']
  #allocation2 [shape = 'f32[1]{0:T(128)S(6)}', space=smem, size = 0x200, scoped, tag = 'scoped memory for tpu_custom_call.1']
  %s0 = inlined_call_operand.vmem [shape: f32[3], index: 0, kind: input, shape index: {}]
  %s1 = inlined_call_operand.vmem [shape: f32[98], index: 1, kind: input, shape index: {}]
  %s2 = inlined_call_operand.<no memory space> [shape: f32[1], index: 2, kind: input, shape index: {}]
  %s3 = inlined_call_operand.hbm [shape: f32[7,352], index: 3, kind: input, shape index: {}]
  %s4 = inlined_call_operand.hbm [shape: f32[2,4,256], index: 4, kind: input, shape index: {}]
  %s5 = inlined_call_operand.hbm [shape: f32[2,4,256], index: 5, kind: output, shape index: {}]
  %s6 = sld [smem:[#allocation0]]
  $region69: #{tpu_custom_call.1} parent=0
    _
  %s8 = ssub.s32 1, %s6
  %s9 = scalar_select 0, %s8, %s6
  %10 = sst [smem:[#allocation2]] %s2
  $region1: #{tpu_custom_call.1} parent=0
    #allocation3 [shape = 'u8[512]{0}', space=smem, size = 0x200, scoped, tag = 'input window, operand 0, single buffered']
    #allocation4 [shape = 's32[2]{0}', space=sflag, size = 0x8, scoped, tag = 'scoped memory for tpu_custom_call.1']
    #allocation5 [shape = 's32[2]{0}', space=sflag, size = 0x8, scoped, tag = 'scoped memory for tpu_custom_call.1']
    #allocation6 [shape = 's32[2]{0}', space=sflag, size = 0x8, scoped, tag = 'scoped memory for tpu_custom_call.1']
    #allocation7 [shape = 'u8[512]{0}', space=smem, size = 0x200, scoped, tag = 'input window, operand 1, single buffered']
    #allocation8 [shape = 's32[1]{0}', space=sflag, size = 0x4, scoped, tag = 'scoped memory for tpu_custom_call.1']
    #allocation9 [shape = 'u8[12288]{0}', space=vmem, size = 0x3000, scoped, tag = 'input window, operand 3, single buffered']
    #allocation10 [shape = 'u8[8192]{0}', space=vmem, size = 0x2000, scoped, tag = 'input window, operand 4']
    #allocation11 [shape = 's32[2]{0}', space=sflag, size = 0x8, scoped, tag = 'scoped memory for tpu_custom_call.1']
    #allocation12 [shape = 'u8[8192]{0}', space=vmem, size = 0x2000, scoped, tag = 'output window, operand 0']
    %11 = vsyncpa [#allocation6], 0
    %12 = vsyncpa [#allocation8], 0
    %13 = vsyncpa [#allocation4], 0
    %14 = vsyncpa [#allocation11], 0
    %s15 = scalar_lea.sflag [#allocation11], 1
    %16 = vsyncpa %s15, 0
    %17 = vsyncpa [#allocation5], 0
    %s18 = scalar_lea.sflag [#allocation5], 1
    %19 = vsyncpa %s18, 0
    loop: start=0, step=1, limit=4
    $region2: #{tpu_custom_call.1} parent=1 // loop_pre_header
      _
    $region3: #{tpu_custom_call.1} parent=1 // loop_header
      %s21 = sphi 0, %s25
      %p22 = scmp.ge.s32.totalorder %s21, 4
      %s29 = sphi 0, %s29
      %s31 = sphi 0, %s29
      %s32 = sphi 0, %s31
      %s46 = sphi 0, %s32
      %s50 = sphi 0, %s50
      %s52 = sphi 0, %s50
      %s53 = sphi 0, %s52
      %s67 = sphi 0, %s53
      %s71 = sphi 0, %s71
      %s73 = sphi 0, %s71
      %s74 = sphi 0, %s73
      %s88 = sphi 0, %s74
      %s92 = sphi 0, %s92
      %s94 = sphi 0, %s92
      %s95 = sphi 0, %s94
      %s109 = sphi 0, %s95
      %s115 = sphi 0, %s117
      %s118 = sphi 0, %s115
      %s119 = sphi 0, %s118
      %s135 = sphi 0, %s119
      %s141 = sphi 0, %s143
      %s144 = sphi 0, %s141
      %s145 = sphi 0, %s144
      %s161 = sphi 0, %s145
    $region4: #{tpu_custom_call.1} parent=1 // loop_header_branch
      %24 = sbr.rel (%p22) target = $region8
    $region5: #{tpu_custom_call.1} parent=1 // loop_body
      %s26 = ssub.s32 %s21, 1
      %s27 = ssub.s32 %s21, 2
      %s28 = sadd.s32 %s21, 1
      %s30 = sadd.s32 %s29, 1
      %p33 = scmp.eq.s32.totalorder %s21, 1
      %p34 = scmp.ne.s32.totalorder %s29, %s31
      %p35 = scmp.eq.s32.totalorder %s21, 0
      %p36 = por %p34, %p35
      %p37 = scmp.ne.s32.totalorder %s29, %s31
      %p38 = scmp.eq.s32.totalorder %s26, 1
      %p39 = por %p37, %p38
      %p40 = scmp.ne.s32.totalorder %s31, %s32
      %p41 = scmp.eq.s32.totalorder %s26, 0
      %p42 = por %p40, %p41
      %p43 = scmp.ne.s32.totalorder %s31, %s32
      %p44 = scmp.eq.s32.totalorder %s27, 1
      %p45 = por %p43, %p44
      %p47 = scmp.ne.s32.totalorder %s32, %s46
      %p48 = scmp.eq.s32.totalorder %s27, 0
      %p49 = por %p47, %p48
      %s51 = sadd.s32 %s50, 1
      %p54 = scmp.eq.s32.totalorder %s21, 1
      %p55 = scmp.ne.s32.totalorder %s50, %s52
      %p56 = scmp.eq.s32.totalorder %s21, 0
      %p57 = por %p55, %p56
      %p58 = scmp.ne.s32.totalorder %s50, %s52
      %p59 = scmp.eq.s32.totalorder %s26, 1
      %p60 = por %p58, %p59
      %p61 = scmp.ne.s32.totalorder %s52, %s53
      %p62 = scmp.eq.s32.totalorder %s26, 0
      %p63 = por %p61, %p62
      %p64 = scmp.ne.s32.totalorder %s52, %s53
      %p65 = scmp.eq.s32.totalorder %s27, 1
      %p66 = por %p64, %p65
      %p68 = scmp.ne.s32.totalorder %s53, %s67
      %p69 = scmp.eq.s32.totalorder %s27, 0
      %p70 = por %p68, %p69
      %s72 = sadd.s32 %s71, 1
      %p75 = scmp.eq.s32.totalorder %s21, 1
      %p76 = scmp.ne.s32.totalorder %s71, %s73
      %p77 = scmp.eq.s32.totalorder %s21, 0
      %p78 = por %p76, %p77
      %p79 = scmp.ne.s32.totalorder %s71, %s73
      %p80 = scmp.eq.s32.totalorder %s26, 1
      %p81 = por %p79, %p80
      %p82 = scmp.ne.s32.totalorder %s73, %s74
      %p83 = scmp.eq.s32.totalorder %s26, 0
      %p84 = por %p82, %p83
      %p85 = scmp.ne.s32.totalorder %s73, %s74
      %p86 = scmp.eq.s32.totalorder %s27, 1
      %p87 = por %p85, %p86
      %p89 = scmp.ne.s32.totalorder %s74, %s88
      %p90 = scmp.eq.s32.totalorder %s27, 0
      %p91 = por %p89, %p90
      %s93 = sadd.s32 %s92, 1
      %p96 = scmp.eq.s32.totalorder %s21, 1
      %p97 = scmp.ne.s32.totalorder %s92, %s94
      %p98 = scmp.eq.s32.totalorder %s21, 0
      %p99 = por %p97, %p98
      %p100 = scmp.ne.s32.totalorder %s92, %s94
      %p101 = scmp.eq.s32.totalorder %s26, 1
      %p102 = por %p100, %p101
      %p103 = scmp.ne.s32.totalorder %s94, %s95
      %p104 = scmp.eq.s32.totalorder %s26, 0
      %p105 = por %p103, %p104
      %p106 = scmp.ne.s32.totalorder %s94, %s95
      %p107 = scmp.eq.s32.totalorder %s27, 1
      %p108 = por %p106, %p107
      %p110 = scmp.ne.s32.totalorder %s95, %s109
      %p111 = scmp.eq.s32.totalorder %s27, 0
      %p112 = por %p110, %p111
      %s113 = ssub.s32 %s21, %s28
      %p114 = scmp.eq.s32.totalorder %s113, 0
      %s116 = sadd.s32 %s115, 1
      %s117 = scalar_select %p114, %s115, %s116
      %p120 = pneg %p114
      %p121 = scmp.eq.s32.totalorder %s21, 1
      %p122 = por %p120, %p121
      %p123 = scmp.ne.s32.totalorder %s115, %s118
      %p124 = scmp.eq.s32.totalorder %s21, 0
      %p125 = por %p123, %p124
      %p126 = scmp.ne.s32.totalorder %s115, %s118
      %p127 = scmp.eq.s32.totalorder %s26, 1
      %p128 = por %p126, %p127
      %p129 = scmp.ne.s32.totalorder %s118, %s119
      %p130 = scmp.eq.s32.totalorder %s26, 0
      %p131 = por %p129, %p130
      %p132 = scmp.ne.s32.totalorder %s118, %s119
      %p133 = scmp.eq.s32.totalorder %s27, 1
      %p134 = por %p132, %p133
      %p136 = scmp.ne.s32.totalorder %s119, %s135
      %p137 = scmp.eq.s32.totalorder %s27, 0
      %p138 = por %p136, %p137
      %s139 = ssub.s32 %s21, %s28
      %p140 = scmp.eq.s32.totalorder %s139, 0
      %s142 = sadd.s32 %s141, 1
      %s143 = scalar_select %p140, %s141, %s142
      %p146 = pneg %p140
      %p147 = scmp.eq.s32.totalorder %s21, 1
      %p148 = por %p146, %p147
      %p149 = scmp.ne.s32.totalorder %s141, %s144
      %p150 = scmp.eq.s32.totalorder %s21, 0
      %p151 = por %p149, %p150
      %p152 = scmp.ne.s32.totalorder %s141, %s144
      %p153 = scmp.eq.s32.totalorder %s26, 1
      %p154 = por %p152, %p153
      %p155 = scmp.ne.s32.totalorder %s144, %s145
      %p156 = scmp.eq.s32.totalorder %s26, 0
      %p157 = por %p155, %p156
      %p158 = scmp.ne.s32.totalorder %s144, %s145
      %p159 = scmp.eq.s32.totalorder %s27, 1
      %p160 = por %p158, %p159
      %p162 = scmp.ne.s32.totalorder %s145, %s161
      %p163 = scmp.eq.s32.totalorder %s27, 0
      %p164 = por %p162, %p163
      %p165 = scmp.le.s32.totalorder 1, %s21
      %p166 = scmp.lt.s32.totalorder %s21, 3
      %p167 = pnand %p165, %p166
      %p168 = pneg %p167
      // Predicated region
      $region9: #{tpu_custom_call.1} parent=5 // pred_check
        _
      $region10: #{tpu_custom_call.1} parent=5 // pred_check_branch
        %170 = sbr.rel (%p167) target = $region12
      $region11: #{tpu_custom_call.1} parent=5 // pred_region
        %s171 = ssub.s32 %s21, 1
        // Predicated region
        $region13: #{tpu_custom_call.1} parent=11 // pred_check
          %p172 = pneg %p42
        $region14: #{tpu_custom_call.1} parent=11 // pred_check_branch
          %174 = sbr.rel (%p172) target = $region16
        $region15: #{tpu_custom_call.1} parent=11 // pred_region
          %176 = vsyncadd [#allocation6], 0
          %s178 = sshll.u32 %s0, 4
          %s179 = int_to_ptr.vmem [resolvable:$true] %s178
          %181 = dma.vmem_to_smem %s179, 16, [#allocation3], [#allocation6]
        $region16: #{tpu_custom_call.1} parent=11 // pred_fallthru
          _
        // Predicated region
        $region17: #{tpu_custom_call.1} parent=11 // pred_check
          %p182 = pneg %p63
        $region18: #{tpu_custom_call.1} parent=11 // pred_check_branch
          %184 = sbr.rel (%p182) target = $region20
        $region19: #{tpu_custom_call.1} parent=11 // pred_region
          %186 = vsyncadd [#allocation8], 0
          %s188 = sshll.u32 %s1, 4
          %s189 = int_to_ptr.vmem [resolvable:$true] %s188
          %191 = dma.vmem_to_smem %s189, 16, [#allocation7], [#allocation8]
        $region20: #{tpu_custom_call.1} parent=11 // pred_fallthru
          _
        // Predicated region
        $region21: #{tpu_custom_call.1} parent=11 // pred_check
          %p192 = pneg %p84
        $region22: #{tpu_custom_call.1} parent=11 // pred_check_branch
          %194 = sbr.rel (%p192) target = $region24
        $region23: #{tpu_custom_call.1} parent=11 // pred_region
          _
        $region24: #{tpu_custom_call.1} parent=11 // pred_fallthru
          _
        // Predicated region
        $region25: #{tpu_custom_call.1} parent=11 // pred_check
          %p195 = pneg %p105
        $region26: #{tpu_custom_call.1} parent=11 // pred_check_branch
          %197 = sbr.rel (%p195) target = $region28
        $region27: #{tpu_custom_call.1} parent=11 // pred_region
          %199 = vsyncadd [#allocation4], 0
          %s201 = sshll.u32 %s3, 4
          %s202 = int_to_ptr.hbm [resolvable:$true] %s201
          %s203 = sshll.u32 [#allocation9], 4
          %s204 = int_to_ptr.vmem [resolvable:$true] %s203
          %206 = dma.hbm_to_vmem [thread:$0]  %s202, 384, %s204, [#allocation4]
        $region28: #{tpu_custom_call.1} parent=11 // pred_fallthru
          _
      $region12: #{tpu_custom_call.1} parent=5 // pred_fallthru
        _
      %p207 = scmp.lt.s32.totalorder %s21, 2
      // Predicated region
      $region29: #{tpu_custom_call.1} parent=5 // pred_check
        %p208 = pneg %p207
      $region30: #{tpu_custom_call.1} parent=5 // pred_check_branch
        %210 = sbr.rel (%p208) target = $region32
      $region31: #{tpu_custom_call.1} parent=5 // pred_region
        // Predicated region
        $region33: #{tpu_custom_call.1} parent=31 // pred_check
          %p211 = pneg %p125
        $region34: #{tpu_custom_call.1} parent=31 // pred_check_branch
          %213 = sbr.rel (%p211) target = $region36
        $region35: #{tpu_custom_call.1} parent=31 // pred_region
          %s214 = sand.u32 %s115, 1
          %s215 = scalar_lea.sflag [#allocation11], %s214
          %s216 = sand.u32 %s115, 1
          %s217 = smul.addr %s216, 8
          %s218 = scalar_lea.vmem [#allocation10], %s217
          %220 = vsyncadd %s215, 0
          %s221 = smul.addr %s21, 2
          %s222 = smul.addr %s221, 4
          %s223 = scalar_lea.hbm %s4, %s222
          %s225 = sshll.u32 %s223, 4
          %s226 = int_to_ptr.hbm [resolvable:$true] %s225
          %s227 = sshll.u32 %s218, 4
          %s228 = int_to_ptr.vmem [resolvable:$true] %s227
          %230 = dma.hbm_to_vmem [thread:$0]  %s226, 128, %s228, %s215
        $region36: #{tpu_custom_call.1} parent=31 // pred_fallthru
          _
      $region32: #{tpu_custom_call.1} parent=5 // pred_fallthru
        _
      %p231 = scmp.le.s32.totalorder 1, %s21
      %p232 = scmp.lt.s32.totalorder %s21, 3
      %p233 = pnand %p231, %p232
      %p234 = pneg %p233
      // Predicated region
      $region37: #{tpu_custom_call.1} parent=5 // pred_check
        _
      $region38: #{tpu_custom_call.1} parent=5 // pred_check_branch
        %236 = sbr.rel (%p233) target = $region40
      $region39: #{tpu_custom_call.1} parent=5 // pred_region
        %s237 = ssub.s32 %s21, 1
        // Predicated region
        $region41: #{tpu_custom_call.1} parent=39 // pred_check
          %p238 = pneg %p42
        $region42: #{tpu_custom_call.1} parent=39 // pred_check_branch
          %240 = sbr.rel (%p238) target = $region44
        $region43: #{tpu_custom_call.1} parent=39 // pred_region
          %242 = dma.done [#allocation6], 16
        $region44: #{tpu_custom_call.1} parent=39 // pred_fallthru
          _
        // Predicated region
        $region45: #{tpu_custom_call.1} parent=39 // pred_check
          %p243 = pneg %p63
        $region46: #{tpu_custom_call.1} parent=39 // pred_check_branch
          %245 = sbr.rel (%p243) target = $region48
        $region47: #{tpu_custom_call.1} parent=39 // pred_region
          %247 = dma.done [#allocation8], 16
        $region48: #{tpu_custom_call.1} parent=39 // pred_fallthru
          _
        // Predicated region
        $region49: #{tpu_custom_call.1} parent=39 // pred_check
          %p248 = pneg %p105
        $region50: #{tpu_custom_call.1} parent=39 // pred_check_branch
          %250 = sbr.rel (%p248) target = $region52
        $region51: #{tpu_custom_call.1} parent=39 // pred_region
          %252 = dma.done [#allocation4], 384
        $region52: #{tpu_custom_call.1} parent=39 // pred_fallthru
          _
        %s253 = sand.u32 %s118, 1
        %s254 = scalar_lea.sflag [#allocation11], %s253
        %s255 = sand.u32 %s118, 1
        %s256 = smul.addr %s255, 8
        %s257 = scalar_lea.vmem [#allocation10], %s256
        // Predicated region
        $region53: #{tpu_custom_call.1} parent=39 // pred_check
          %p258 = pneg %p131
        $region54: #{tpu_custom_call.1} parent=39 // pred_check_branch
          %260 = sbr.rel (%p258) target = $region56
        $region55: #{tpu_custom_call.1} parent=39 // pred_region
          %262 = dma.done %s254, 128
        $region56: #{tpu_custom_call.1} parent=39 // pred_fallthru
          _
        %263 = sfence
        %p264 = pneg %p42
        %p265 = pneg %p39
        %p266 = pneg %p63
        %p267 = pneg %p60
        %p268 = pneg %p84
        %p269 = pneg %p81
        %p270 = pneg %p105
        %p271 = pneg %p102
        %s272 = sand.u32 %s118, 1
        %s273 = scalar_lea.sflag [#allocation11], %s272
        %s274 = sand.u32 %s118, 1
        %s275 = smul.addr %s274, 8
        %s276 = scalar_lea.vmem [#allocation10], %s275
        %p277 = pneg %p131
        %p278 = pneg %p128
        %p279 = pneg %p157
        %p280 = pneg %p154
        %s281 = sand.u32 %s144, 1
        %s282 = scalar_lea.sflag [#allocation5], %s281
        %s283 = sand.u32 %s144, 1
        %s284 = smul.addr %s283, 8
        %s285 = scalar_lea.vmem [#allocation12], %s284
        %v286 = vld [vmem:[%s257] sm:$0xff]
        %288 = vst [vmem:[#allocation1] ss:$2 sm:$0xff] %v286
        %v289 = vld.sshfl [vmem:[#allocation1] sm:$0xff pattern:$0x75316420]
        %v290 = vld.sshfl [vmem:[#allocation1 + $0x8] sm:$0xff pattern:$0x75316420]
        %vm293 = vcmask 1043456
        %v294 = vsel %vm293, %v289, 0.0
        %v295 = vsel %vm293, %v290, 0.0
        %v296 = vadd.f32 %v294, %v295
        %297 = vadd.xlane.f32.xlu0 %v296
        %v298 = vpop.xlane.xlu0 %297
        %v299 = vmul.f32 %v298, 0.00390625
        %v301 = vrot.slane %v299, 7
        %vm303 = vcmask 1040384
        %v304 = vsel %vm303, 0.0, %v301
        %vm305 = vcmask 1044480
        %v306 = vsel %vm305, %v304, 0.0
        %s307 = sld [smem:[#allocation3]]
        %v308 = vstv %s307
        %v309 = vmul.f32 %v308, %v306
        %s310 = sld [smem:[#allocation3 + $0x1]]
        %v311 = vstv %s310
        %v312 = vmul.f32 %v311, %v306
        %v314 = vrot.slane %v312, 1
        %v316 = vadd.f32 %v309, %v314
        %s317 = sld [smem:[#allocation3 + $0x2]]
        %v318 = vstv %s317
        %v319 = vmul.f32 %v318, %v306
        %v321 = vrot.slane %v319, 2
        %v323 = vadd.f32 %v316, %v321
        %v324 = vxor.u32 %v323, 2147483648
        %v325 = vmul.f32 %v324, 1.442695
        %v326 = vpow.pop %v325
        %v327 = vadd.f32 %v326, 1.0
        %v328 = vrcp.pop %v327
        %v329 = vmul.f32 %v327, %v328
        %v330 = vsub.f32 1.0, %v329
        %v331 = vmul.f32 %v328, %v330
        %v332 = vadd.f32 %v328, %v331
        %vm333 = vweird.f32 %v327
        %vm334 = vweird.f32 %v328
        %vm335 = vmor %vm333, %vm334
        %v336 = vsel %vm335, %v328, %v332
        %v337 = vand.u32 2147483647, %v327
        %vm338 = vcmp.eq.f32.partialorder %v337, 8.507059e+37
        %v339 = vand.u32 %v327, 2147483648
        %v340 = vor.u32 1.1754944e-38, %v339
        %v341 = vsel %vm338, %v340, %v336
        %v342 = vmul.f32 1.0, %v341
        %344 = vset.pattern.permute.xlu0 0
        %345 = vperm.xlu0 %344, %v342
        %v346 = vpop.permute.xlu0 %345
        %v348 = vunpack.c.l.s4 839922192
        %v349 = vunpack.c.0.s8 %v348
        %v350 = vperm.slane %v346, %v349
        %v352 = vmul.f32 %v286, %v350
        %354 = vst [vmem:[#allocation1] ss:$2 sm:$0xff] %v352
        %v355 = vld.sshfl [vmem:[#allocation1] sm:$0xff pattern:$0x75316420]
        %v356 = vld.sshfl [vmem:[#allocation1 + $0x8] sm:$0xff pattern:$0x75316420]
        %v359 = vsel %vm293, %v355, 0.0
        %v360 = vrot.slane %v359, 4
        %v361 = vadd.f32 %v359, %v360
        %v362 = vrot.slane %v361, 2
        %v363 = vadd.f32 %v361, %v362
        %v364 = vrot.slane %v363, 1
        %v365 = vadd.f32 %v363, %v364
        %v366 = vsel %vm293, %v356, 0.0
        %v367 = vrot.slane %v366, 4
        %v368 = vadd.f32 %v366, %v367
        %v369 = vrot.slane %v368, 2
        %v370 = vadd.f32 %v368, %v369
        %v371 = vrot.slane %v370, 1
        %v372 = vadd.f32 %v370, %v371
        %v373 = vmul.f32 %v365, 0.25
        %v374 = vmul.f32 %v372, 0.25
        %375 = vst [vmem:[#allocation1] ss:$2 sm:$0xff] %v352
        %v376 = vld.sshfl [vmem:[#allocation1] sm:$0xff pattern:$0x75316420]
        %v377 = vld.sshfl [vmem:[#allocation1 + $0x8] sm:$0xff pattern:$0x75316420]
        %v380 = vsel %vm293, %v376, -inf
        %v381 = vrot.slane %v380, 4
        %v382 = vmax.f32 %v380, %v381
        %v383 = vrot.slane %v382, 2
        %v384 = vmax.f32 %v382, %v383
        %v385 = vrot.slane %v384, 1
        %v386 = vmax.f32 %v384, %v385
        %v387 = vsel %vm293, %v377, -inf
        %v388 = vrot.slane %v387, 4
        %v389 = vmax.f32 %v387, %v388
        %v390 = vrot.slane %v389, 2
        %v391 = vmax.f32 %v389, %v390
        %v392 = vrot.slane %v391, 1
        %v393 = vmax.f32 %v391, %v392
        %396 = vrot.lane.b32.xlu0 %v373, 51
        %v397 = vpop.permute.xlu0 %396
        %398 = vrot.lane.b32.xlu0 %v374, 51
        %v399 = vpop.permute.xlu0 %398
        %vm400 = vcmask 416768
        %v401 = vsel %vm400, %v397, %v399
        %v405 = vsel %vm400, 0.0, %v397
        %v406 = vsel %vm400, %v399, 0.0
        %409 = vrot.lane.b32.xlu0 %v386, 51
        %v410 = vpop.permute.xlu0 %409
        %411 = vrot.lane.b32.xlu0 %v393, 51
        %v412 = vpop.permute.xlu0 %411
        %v413 = vsel %vm400, %v410, %v412
        %v417 = vsel %vm400, 0.0, %v410
        %v418 = vsel %vm400, %v412, 0.0
        %v419 = vld [vmem:[#allocation9] sm:$0x7f]
        %v420 = vld [vmem:[#allocation9 + $0x8] sm:$0x7f]
        %v421 = vld [vmem:[#allocation9 + $0x10] sm:$0x7f]
        %v422 = vmul.f32 %v405, %v419
        %v423 = vmul.f32 %v401, %v420
        %v424 = vmul.f32 %v406, %v421
        %v425 = vmul.f32 %v417, %v419
        %v426 = vmul.f32 %v413, %v420
        %v427 = vmul.f32 %v418, %v421
        %s428 = sld [smem:[#allocation7]]
        %v429 = vstv %s428
        %v430 = vmul.f32 %v429, %v422
        %v431 = vmul.f32 %v429, %v423
        %s432 = sld [smem:[#allocation7 + $0x31]]
        %v433 = vstv %s432
        %v434 = vmul.f32 %v433, %v425
        %v435 = vmul.f32 %v433, %v426
        %v436 = vadd.f32 %v430, %v434
        %v437 = vadd.f32 %v431, %v435
        %s438 = sld [smem:[#allocation7 + $0x7]]
        %v439 = vstv %s438
        %v440 = vmul.f32 %v439, %v422
        %v441 = vmul.f32 %v439, %v423
        %v442 = vmul.f32 %v439, %v424
        %s443 = sld [smem:[#allocation7 + $0x38]]
        %v444 = vstv %s443
        %v445 = vmul.f32 %v444, %v425
        %v446 = vmul.f32 %v444, %v426
        %v447 = vmul.f32 %v444, %v427
        %v448 = vadd.f32 %v440, %v445
        %v449 = vadd.f32 %v441, %v446
        %v450 = vadd.f32 %v442, %v447
        %454 = vrot.lane.b32.xlu0 %v448, 112
        %v455 = vpop.permute.xlu0 %454
        %456 = vrot.lane.b32.xlu0 %v449, 112
        %v457 = vpop.permute.xlu0 %456
        %458 = vrot.lane.b32.xlu0 %v450, 112
        %v459 = vpop.permute.xlu0 %458
        %vm460 = vcmask 916480
        %v461 = vsel %vm460, %v455, %v457
        %v462 = vsel %vm460, %v457, %v459
        %v465 = vadd.f32 %v436, %v461
        %v466 = vadd.f32 %v437, %v462
        %s467 = sld [smem:[#allocation7 + $0xe]]
        %v468 = vstv %s467
        %v469 = vmul.f32 %v468, %v422
        %v470 = vmul.f32 %v468, %v423
        %v471 = vmul.f32 %v468, %v424
        %s472 = sld [smem:[#allocation7 + $0x3f]]
        %v473 = vstv %s472
        %v474 = vmul.f32 %v473, %v425
        %v475 = vmul.f32 %v473, %v426
        %v476 = vmul.f32 %v473, %v427
        %v477 = vadd.f32 %v469, %v474
        %v478 = vadd.f32 %v470, %v475
        %v479 = vadd.f32 %v471, %v476
        %483 = vrot.lane.b32.xlu0 %v477, 96
        %v484 = vpop.permute.xlu0 %483
        %485 = vrot.lane.b32.xlu0 %v478, 96
        %v486 = vpop.permute.xlu0 %485
        %487 = vrot.lane.b32.xlu0 %v479, 96
        %v488 = vpop.permute.xlu0 %487
        %vm489 = vcmask 785408
        %v490 = vsel %vm489, %v484, %v486
        %v491 = vsel %vm489, %v486, %v488
        %v494 = vadd.f32 %v465, %v490
        %v495 = vadd.f32 %v466, %v491
        %s496 = sld [smem:[#allocation7 + $0x15]]
        %v497 = vstv %s496
        %v498 = vmul.f32 %v497, %v422
        %v499 = vmul.f32 %v497, %v423
        %v500 = vmul.f32 %v497, %v424
        %s501 = sld [smem:[#allocation7 + $0x46]]
        %v502 = vstv %s501
        %v503 = vmul.f32 %v502, %v425
        %v504 = vmul.f32 %v502, %v426
        %v505 = vmul.f32 %v502, %v427
        %v506 = vadd.f32 %v498, %v503
        %v507 = vadd.f32 %v499, %v504
        %v508 = vadd.f32 %v500, %v505
        %512 = vrot.lane.b32.xlu0 %v506, 80
        %v513 = vpop.permute.xlu0 %512
        %514 = vrot.lane.b32.xlu0 %v507, 80
        %v515 = vpop.permute.xlu0 %514
        %516 = vrot.lane.b32.xlu0 %v508, 80
        %v517 = vpop.permute.xlu0 %516
        %vm518 = vcmask 654336
        %v519 = vsel %vm518, %v513, %v515
        %v520 = vsel %vm518, %v515, %v517
        %v523 = vadd.f32 %v494, %v519
        %v524 = vadd.f32 %v495, %v520
        %s525 = sld [smem:[#allocation7 + $0x1c]]
        %v526 = vstv %s525
        %v527 = vmul.f32 %v526, %v422
        %v528 = vmul.f32 %v526, %v423
        %v529 = vmul.f32 %v526, %v424
        %s530 = sld [smem:[#allocation7 + $0x4d]]
        %v531 = vstv %s530
        %v532 = vmul.f32 %v531, %v425
        %v533 = vmul.f32 %v531, %v426
        %v534 = vmul.f32 %v531, %v427
        %v535 = vadd.f32 %v527, %v532
        %v536 = vadd.f32 %v528, %v533
        %v537 = vadd.f32 %v529, %v534
        %541 = vrot.lane.b32.xlu0 %v535, 64
        %v542 = vpop.permute.xlu0 %541
        %543 = vrot.lane.b32.xlu0 %v536, 64
        %v544 = vpop.permute.xlu0 %543
        %545 = vrot.lane.b32.xlu0 %v537, 64
        %v546 = vpop.permute.xlu0 %545
        %vm547 = vcmask 523264
        %v548 = vsel %vm547, %v542, %v544
        %v549 = vsel %vm547, %v544, %v546
        %v552 = vadd.f32 %v523, %v548
        %v553 = vadd.f32 %v524, %v549
        %s554 = sld [smem:[#allocation7 + $0x23]]
        %v555 = vstv %s554
        %v556 = vmul.f32 %v555, %v422
        %v557 = vmul.f32 %v555, %v423
        %v558 = vmul.f32 %v555, %v424
        %s559 = sld [smem:[#allocation7 + $0x54]]
        %v560 = vstv %s559
        %v561 = vmul.f32 %v560, %v425
        %v562 = vmul.f32 %v560, %v426
        %v563 = vmul.f32 %v560, %v427
        %v564 = vadd.f32 %v556, %v561
        %v565 = vadd.f32 %v557, %v562
        %v566 = vadd.f32 %v558, %v563
        %570 = vrot.lane.b32.xlu0 %v564, 48
        %v571 = vpop.permute.xlu0 %570
        %572 = vrot.lane.b32.xlu0 %v565, 48
        %v573 = vpop.permute.xlu0 %572
        %574 = vrot.lane.b32.xlu0 %v566, 48
        %v575 = vpop.permute.xlu0 %574
        %vm576 = vcmask 392192
        %v577 = vsel %vm576, %v571, %v573
        %v578 = vsel %vm576, %v573, %v575
        %v581 = vadd.f32 %v552, %v577
        %v582 = vadd.f32 %v553, %v578
        %s583 = sld [smem:[#allocation7 + $0x2a]]
        %v584 = vstv %s583
        %v585 = vmul.f32 %v584, %v422
        %v586 = vmul.f32 %v584, %v423
        %v587 = vmul.f32 %v584, %v424
        %s588 = sld [smem:[#allocation7 + $0x5b]]
        %v589 = vstv %s588
        %v590 = vmul.f32 %v589, %v425
        %v591 = vmul.f32 %v589, %v426
        %v592 = vmul.f32 %v589, %v427
        %v593 = vadd.f32 %v585, %v590
        %v594 = vadd.f32 %v586, %v591
        %v595 = vadd.f32 %v587, %v592
        %599 = vrot.lane.b32.xlu0 %v593, 32
        %v600 = vpop.permute.xlu0 %599
        %601 = vrot.lane.b32.xlu0 %v594, 32
        %v602 = vpop.permute.xlu0 %601
        %603 = vrot.lane.b32.xlu0 %v595, 32
        %v604 = vpop.permute.xlu0 %603
        %vm605 = vcmask 261120
        %v606 = vsel %vm605, %v600, %v602
        %v607 = vsel %vm605, %v602, %v604
        %v610 = vadd.f32 %v581, %v606
        %v611 = vadd.f32 %v582, %v607
        %v615 = vrot.slane %v419, 1
        %v616 = vrot.slane %v420, 1
        %v617 = vrot.slane %v421, 1
        %618 = vrot.lane.b32.xlu0 %v615, 1
        %v619 = vpop.permute.xlu0 %618
        %620 = vrot.lane.b32.xlu0 %v616, 1
        %v621 = vpop.permute.xlu0 %620
        %622 = vrot.lane.b32.xlu0 %v617, 1
        %v623 = vpop.permute.xlu0 %622
        %vm624 = vcmask 7168
        %v625 = vsel %vm624, %v619, %v621
        %v626 = vsel %vm624, %v621, %v623
        %v630 = vmul.f32 %v405, %v619
        %v631 = vmul.f32 %v401, %v625
        %v632 = vmul.f32 %v406, %v626
        %v633 = vmul.f32 %v417, %v619
        %v634 = vmul.f32 %v413, %v625
        %v635 = vmul.f32 %v418, %v626
        %s636 = sld [smem:[#allocation7 + $0x1]]
        %v637 = vstv %s636
        %v638 = vmul.f32 %v637, %v630
        %v639 = vmul.f32 %v637, %v631
        %v640 = vmul.f32 %v637, %v632
        %s641 = sld [smem:[#allocation7 + $0x32]]
        %v642 = vstv %s641
        %v643 = vmul.f32 %v642, %v633
        %v644 = vmul.f32 %v642, %v634
        %v645 = vmul.f32 %v642, %v635
        %v646 = vadd.f32 %v638, %v643
        %v647 = vadd.f32 %v639, %v644
        %v648 = vadd.f32 %v640, %v645
        %652 = vrot.lane.b32.xlu0 %v646, 127
        %v653 = vpop.permute.xlu0 %652
        %654 = vrot.lane.b32.xlu0 %v647, 127
        %v655 = vpop.permute.xlu0 %654
        %656 = vrot.lane.b32.xlu0 %v648, 127
        %v657 = vpop.permute.xlu0 %656
        %vm658 = vcmask 1039360
        %v659 = vsel %vm658, %v653, %v655
        %v660 = vsel %vm658, %v655, %v657
        %v663 = vadd.f32 %v610, %v659
        %v664 = vadd.f32 %v611, %v660
        %s665 = sld [smem:[#allocation7 + $0x8]]
        %v666 = vstv %s665
        %v667 = vmul.f32 %v666, %v630
        %v668 = vmul.f32 %v666, %v631
        %v669 = vmul.f32 %v666, %v632
        %s670 = sld [smem:[#allocation7 + $0x39]]
        %v671 = vstv %s670
        %v672 = vmul.f32 %v671, %v633
        %v673 = vmul.f32 %v671, %v634
        %v674 = vmul.f32 %v671, %v635
        %v675 = vadd.f32 %v667, %v672
        %v676 = vadd.f32 %v668, %v673
        %v677 = vadd.f32 %v669, %v674
        %681 = vrot.lane.b32.xlu0 %v675, 111
        %v682 = vpop.permute.xlu0 %681
        %683 = vrot.lane.b32.xlu0 %v676, 111
        %v684 = vpop.permute.xlu0 %683
        %685 = vrot.lane.b32.xlu0 %v677, 111
        %v686 = vpop.permute.xlu0 %685
        %vm687 = vcmask 908288
        %v688 = vsel %vm687, %v682, %v684
        %v689 = vsel %vm687, %v684, %v686
        %v692 = vadd.f32 %v663, %v688
        %v693 = vadd.f32 %v664, %v689
        %s694 = sld [smem:[#allocation7 + $0xf]]
        %v695 = vstv %s694
        %v696 = vmul.f32 %v695, %v630
        %v697 = vmul.f32 %v695, %v631
        %v698 = vmul.f32 %v695, %v632
        %s699 = sld [smem:[#allocation7 + $0x40]]
        %v700 = vstv %s699
        %v701 = vmul.f32 %v700, %v633
        %v702 = vmul.f32 %v700, %v634
        %v703 = vmul.f32 %v700, %v635
        %v704 = vadd.f32 %v696, %v701
        %v705 = vadd.f32 %v697, %v702
        %v706 = vadd.f32 %v698, %v703
        %710 = vrot.lane.b32.xlu0 %v704, 95
        %v711 = vpop.permute.xlu0 %710
        %712 = vrot.lane.b32.xlu0 %v705, 95
        %v713 = vpop.permute.xlu0 %712
        %714 = vrot.lane.b32.xlu0 %v706, 95
        %v715 = vpop.permute.xlu0 %714
        %vm716 = vcmask 777216
        %v717 = vsel %vm716, %v711, %v713
        %v718 = vsel %vm716, %v713, %v715
        %v721 = vadd.f32 %v692, %v717
        %v722 = vadd.f32 %v693, %v718
        %s723 = sld [smem:[#allocation7 + $0x16]]
        %v724 = vstv %s723
        %v725 = vmul.f32 %v724, %v630
        %v726 = vmul.f32 %v724, %v631
        %v727 = vmul.f32 %v724, %v632
        %s728 = sld [smem:[#allocation7 + $0x47]]
        %v729 = vstv %s728
        %v730 = vmul.f32 %v729, %v633
        %v731 = vmul.f32 %v729, %v634
        %v732 = vmul.f32 %v729, %v635
        %v733 = vadd.f32 %v725, %v730
        %v734 = vadd.f32 %v726, %v731
        %v735 = vadd.f32 %v727, %v732
        %739 = vrot.lane.b32.xlu0 %v733, 79
        %v740 = vpop.permute.xlu0 %739
        %741 = vrot.lane.b32.xlu0 %v734, 79
        %v742 = vpop.permute.xlu0 %741
        %743 = vrot.lane.b32.xlu0 %v735, 79
        %v744 = vpop.permute.xlu0 %743
        %vm745 = vcmask 646144
        %v746 = vsel %vm745, %v740, %v742
        %v747 = vsel %vm745, %v742, %v744
        %v750 = vadd.f32 %v721, %v746
        %v751 = vadd.f32 %v722, %v747
        %s752 = sld [smem:[#allocation7 + $0x1d]]
        %v753 = vstv %s752
        %v754 = vmul.f32 %v753, %v630
        %v755 = vmul.f32 %v753, %v631
        %v756 = vmul.f32 %v753, %v632
        %s757 = sld [smem:[#allocation7 + $0x4e]]
        %v758 = vstv %s757
        %v759 = vmul.f32 %v758, %v633
        %v760 = vmul.f32 %v758, %v634
        %v761 = vmul.f32 %v758, %v635
        %v762 = vadd.f32 %v754, %v759
        %v763 = vadd.f32 %v755, %v760
        %v764 = vadd.f32 %v756, %v761
        %768 = vrot.lane.b32.xlu0 %v762, 63
        %v769 = vpop.permute.xlu0 %768
        %770 = vrot.lane.b32.xlu0 %v763, 63
        %v771 = vpop.permute.xlu0 %770
        %772 = vrot.lane.b32.xlu0 %v764, 63
        %v773 = vpop.permute.xlu0 %772
        %vm774 = vcmask 515072
        %v775 = vsel %vm774, %v769, %v771
        %v776 = vsel %vm774, %v771, %v773
        %v779 = vadd.f32 %v750, %v775
        %v780 = vadd.f32 %v751, %v776
        %s781 = sld [smem:[#allocation7 + $0x24]]
        %v782 = vstv %s781
        %v783 = vmul.f32 %v782, %v630
        %v784 = vmul.f32 %v782, %v631
        %v785 = vmul.f32 %v782, %v632
        %s786 = sld [smem:[#allocation7 + $0x55]]
        %v787 = vstv %s786
        %v788 = vmul.f32 %v787, %v633
        %v789 = vmul.f32 %v787, %v634
        %v790 = vmul.f32 %v787, %v635
        %v791 = vadd.f32 %v783, %v788
        %v792 = vadd.f32 %v784, %v789
        %v793 = vadd.f32 %v785, %v790
        %797 = vrot.lane.b32.xlu0 %v791, 47
        %v798 = vpop.permute.xlu0 %797
        %799 = vrot.lane.b32.xlu0 %v792, 47
        %v800 = vpop.permute.xlu0 %799
        %801 = vrot.lane.b32.xlu0 %v793, 47
        %v802 = vpop.permute.xlu0 %801
        %vm803 = vcmask 384000
        %v804 = vsel %vm803, %v798, %v800
        %v805 = vsel %vm803, %v800, %v802
        %v808 = vadd.f32 %v779, %v804
        %v809 = vadd.f32 %v780, %v805
        %s810 = sld [smem:[#allocation7 + $0x2b]]
        %v811 = vstv %s810
        %v812 = vmul.f32 %v811, %v630
        %v813 = vmul.f32 %v811, %v631
        %v814 = vmul.f32 %v811, %v632
        %s815 = sld [smem:[#allocation7 + $0x5c]]
        %v816 = vstv %s815
        %v817 = vmul.f32 %v816, %v633
        %v818 = vmul.f32 %v816, %v634
        %v819 = vmul.f32 %v816, %v635
        %v820 = vadd.f32 %v812, %v817
        %v821 = vadd.f32 %v813, %v818
        %v822 = vadd.f32 %v814, %v819
        %826 = vrot.lane.b32.xlu0 %v820, 31
        %v827 = vpop.permute.xlu0 %826
        %828 = vrot.lane.b32.xlu0 %v821, 31
        %v829 = vpop.permute.xlu0 %828
        %830 = vrot.lane.b32.xlu0 %v822, 31
        %v831 = vpop.permute.xlu0 %830
        %vm832 = vcmask 252928
        %v833 = vsel %vm832, %v827, %v829
        %v834 = vsel %vm832, %v829, %v831
        %v837 = vadd.f32 %v808, %v833
        %v838 = vadd.f32 %v809, %v834
        %v839 = vrot.slane %v419, 2
        %v840 = vrot.slane %v420, 2
        %v841 = vrot.slane %v421, 2
        %842 = vrot.lane.b32.xlu0 %v839, 2
        %v843 = vpop.permute.xlu0 %842
        %844 = vrot.lane.b32.xlu0 %v840, 2
        %v845 = vpop.permute.xlu0 %844
        %846 = vrot.lane.b32.xlu0 %v841, 2
        %v847 = vpop.permute.xlu0 %846
        %vm848 = vcmask 15360
        %v849 = vsel %vm848, %v843, %v845
        %v850 = vsel %vm848, %v845, %v847
        %v854 = vmul.f32 %v405, %v843
        %v855 = vmul.f32 %v401, %v849
        %v856 = vmul.f32 %v406, %v850
        %v857 = vmul.f32 %v417, %v843
        %v858 = vmul.f32 %v413, %v849
        %v859 = vmul.f32 %v418, %v850
        %s860 = sld [smem:[#allocation7 + $0x2]]
        %v861 = vstv %s860
        %v862 = vmul.f32 %v861, %v854
        %v863 = vmul.f32 %v861, %v855
        %v864 = vmul.f32 %v861, %v856
        %s865 = sld [smem:[#allocation7 + $0x33]]
        %v866 = vstv %s865
        %v867 = vmul.f32 %v866, %v857
        %v868 = vmul.f32 %v866, %v858
        %v869 = vmul.f32 %v866, %v859
        %v870 = vadd.f32 %v862, %v867
        %v871 = vadd.f32 %v863, %v868
        %v872 = vadd.f32 %v864, %v869
        %876 = vrot.lane.b32.xlu0 %v870, 126
        %v877 = vpop.permute.xlu0 %876
        %878 = vrot.lane.b32.xlu0 %v871, 126
        %v879 = vpop.permute.xlu0 %878
        %880 = vrot.lane.b32.xlu0 %v872, 126
        %v881 = vpop.permute.xlu0 %880
        %vm882 = vcmask 1031168
        %v883 = vsel %vm882, %v877, %v879
        %v884 = vsel %vm882, %v879, %v881
        %v887 = vadd.f32 %v837, %v883
        %v888 = vadd.f32 %v838, %v884
        %s889 = sld [smem:[#allocation7 + $0x9]]
        %v890 = vstv %s889
        %v891 = vmul.f32 %v890, %v854
        %v892 = vmul.f32 %v890, %v855
        %v893 = vmul.f32 %v890, %v856
        %s894 = sld [smem:[#allocation7 + $0x3a]]
        %v895 = vstv %s894
        %v896 = vmul.f32 %v895, %v857
        %v897 = vmul.f32 %v895, %v858
        %v898 = vmul.f32 %v895, %v859
        %v899 = vadd.f32 %v891, %v896
        %v900 = vadd.f32 %v892, %v897
        %v901 = vadd.f32 %v893, %v898
        %905 = vrot.lane.b32.xlu0 %v899, 110
        %v906 = vpop.permute.xlu0 %905
        %907 = vrot.lane.b32.xlu0 %v900, 110
        %v908 = vpop.permute.xlu0 %907
        %909 = vrot.lane.b32.xlu0 %v901, 110
        %v910 = vpop.permute.xlu0 %909
        %vm911 = vcmask 900096
        %v912 = vsel %vm911, %v906, %v908
        %v913 = vsel %vm911, %v908, %v910
        %v916 = vadd.f32 %v887, %v912
        %v917 = vadd.f32 %v888, %v913
        %s918 = sld [smem:[#allocation7 + $0x10]]
        %v919 = vstv %s918
        %v920 = vmul.f32 %v919, %v854
        %v921 = vmul.f32 %v919, %v855
        %v922 = vmul.f32 %v919, %v856
        %s923 = sld [smem:[#allocation7 + $0x41]]
        %v924 = vstv %s923
        %v925 = vmul.f32 %v924, %v857
        %v926 = vmul.f32 %v924, %v858
        %v927 = vmul.f32 %v924, %v859
        %v928 = vadd.f32 %v920, %v925
        %v929 = vadd.f32 %v921, %v926
        %v930 = vadd.f32 %v922, %v927
        %934 = vrot.lane.b32.xlu0 %v928, 94
        %v935 = vpop.permute.xlu0 %934
        %936 = vrot.lane.b32.xlu0 %v929, 94
        %v937 = vpop.permute.xlu0 %936
        %938 = vrot.lane.b32.xlu0 %v930, 94
        %v939 = vpop.permute.xlu0 %938
        %vm940 = vcmask 769024
        %v941 = vsel %vm940, %v935, %v937
        %v942 = vsel %vm940, %v937, %v939
        %v945 = vadd.f32 %v916, %v941
        %v946 = vadd.f32 %v917, %v942
        %s947 = sld [smem:[#allocation7 + $0x17]]
        %v948 = vstv %s947
        %v949 = vmul.f32 %v948, %v854
        %v950 = vmul.f32 %v948, %v855
        %v951 = vmul.f32 %v948, %v856
        %s952 = sld [smem:[#allocation7 + $0x48]]
        %v953 = vstv %s952
        %v954 = vmul.f32 %v953, %v857
        %v955 = vmul.f32 %v953, %v858
        %v956 = vmul.f32 %v953, %v859
        %v957 = vadd.f32 %v949, %v954
        %v958 = vadd.f32 %v950, %v955
        %v959 = vadd.f32 %v951, %v956
        %963 = vrot.lane.b32.xlu0 %v957, 78
        %v964 = vpop.permute.xlu0 %963
        %965 = vrot.lane.b32.xlu0 %v958, 78
        %v966 = vpop.permute.xlu0 %965
        %967 = vrot.lane.b32.xlu0 %v959, 78
        %v968 = vpop.permute.xlu0 %967
        %vm969 = vcmask 637952
        %v970 = vsel %vm969, %v964, %v966
        %v971 = vsel %vm969, %v966, %v968
        %v974 = vadd.f32 %v945, %v970
        %v975 = vadd.f32 %v946, %v971
        %s976 = sld [smem:[#allocation7 + $0x1e]]
        %v977 = vstv %s976
        %v978 = vmul.f32 %v977, %v854
        %v979 = vmul.f32 %v977, %v855
        %v980 = vmul.f32 %v977, %v856
        %s981 = sld [smem:[#allocation7 + $0x4f]]
        %v982 = vstv %s981
        %v983 = vmul.f32 %v982, %v857
        %v984 = vmul.f32 %v982, %v858
        %v985 = vmul.f32 %v982, %v859
        %v986 = vadd.f32 %v978, %v983
        %v987 = vadd.f32 %v979, %v984
        %v988 = vadd.f32 %v980, %v985
        %992 = vrot.lane.b32.xlu0 %v986, 62
        %v993 = vpop.permute.xlu0 %992
        %994 = vrot.lane.b32.xlu0 %v987, 62
        %v995 = vpop.permute.xlu0 %994
        %996 = vrot.lane.b32.xlu0 %v988, 62
        %v997 = vpop.permute.xlu0 %996
        %vm998 = vcmask 506880
        %v999 = vsel %vm998, %v993, %v995
        %v1000 = vsel %vm998, %v995, %v997
        %v1003 = vadd.f32 %v974, %v999
        %v1004 = vadd.f32 %v975, %v1000
        %s1005 = sld [smem:[#allocation7 + $0x25]]
        %v1006 = vstv %s1005
        %v1007 = vmul.f32 %v1006, %v854
        %v1008 = vmul.f32 %v1006, %v855
        %v1009 = vmul.f32 %v1006, %v856
        %s1010 = sld [smem:[#allocation7 + $0x56]]
        %v1011 = vstv %s1010
        %v1012 = vmul.f32 %v1011, %v857
        %v1013 = vmul.f32 %v1011, %v858
        %v1014 = vmul.f32 %v1011, %v859
        %v1015 = vadd.f32 %v1007, %v1012
        %v1016 = vadd.f32 %v1008, %v1013
        %v1017 = vadd.f32 %v1009, %v1014
        %1021 = vrot.lane.b32.xlu0 %v1015, 46
        %v1022 = vpop.permute.xlu0 %1021
        %1023 = vrot.lane.b32.xlu0 %v1016, 46
        %v1024 = vpop.permute.xlu0 %1023
        %1025 = vrot.lane.b32.xlu0 %v1017, 46
        %v1026 = vpop.permute.xlu0 %1025
        %vm1027 = vcmask 375808
        %v1028 = vsel %vm1027, %v1022, %v1024
        %v1029 = vsel %vm1027, %v1024, %v1026
        %v1032 = vadd.f32 %v1003, %v1028
        %v1033 = vadd.f32 %v1004, %v1029
        %s1034 = sld [smem:[#allocation7 + $0x2c]]
        %v1035 = vstv %s1034
        %v1036 = vmul.f32 %v1035, %v854
        %v1037 = vmul.f32 %v1035, %v855
        %v1038 = vmul.f32 %v1035, %v856
        %s1039 = sld [smem:[#allocation7 + $0x5d]]
        %v1040 = vstv %s1039
        %v1041 = vmul.f32 %v1040, %v857
        %v1042 = vmul.f32 %v1040, %v858
        %v1043 = vmul.f32 %v1040, %v859
        %v1044 = vadd.f32 %v1036, %v1041
        %v1045 = vadd.f32 %v1037, %v1042
        %v1046 = vadd.f32 %v1038, %v1043
        %1050 = vrot.lane.b32.xlu0 %v1044, 30
        %v1051 = vpop.permute.xlu0 %1050
        %1052 = vrot.lane.b32.xlu0 %v1045, 30
        %v1053 = vpop.permute.xlu0 %1052
        %1054 = vrot.lane.b32.xlu0 %v1046, 30
        %v1055 = vpop.permute.xlu0 %1054
        %vm1056 = vcmask 244736
        %v1057 = vsel %vm1056, %v1051, %v1053
        %v1058 = vsel %vm1056, %v1053, %v1055
        %v1061 = vadd.f32 %v1032, %v1057
        %v1062 = vadd.f32 %v1033, %v1058
        %v1063 = vrot.slane %v419, 3
        %v1064 = vrot.slane %v420, 3
        %v1065 = vrot.slane %v421, 3
        %1066 = vrot.lane.b32.xlu0 %v1063, 3
        %v1067 = vpop.permute.xlu0 %1066
        %1068 = vrot.lane.b32.xlu0 %v1064, 3
        %v1069 = vpop.permute.xlu0 %1068
        %1070 = vrot.lane.b32.xlu0 %v1065, 3
        %v1071 = vpop.permute.xlu0 %1070
        %vm1072 = vcmask 23552
        %v1073 = vsel %vm1072, %v1067, %v1069
        %v1074 = vsel %vm1072, %v1069, %v1071
        %v1078 = vmul.f32 %v405, %v1067
        %v1079 = vmul.f32 %v401, %v1073
        %v1080 = vmul.f32 %v406, %v1074
        %v1081 = vmul.f32 %v417, %v1067
        %v1082 = vmul.f32 %v413, %v1073
        %v1083 = vmul.f32 %v418, %v1074
        %s1084 = sld [smem:[#allocation7 + $0x3]]
        %v1085 = vstv %s1084
        %v1086 = vmul.f32 %v1085, %v1078
        %v1087 = vmul.f32 %v1085, %v1079
        %v1088 = vmul.f32 %v1085, %v1080
        %s1089 = sld [smem:[#allocation7 + $0x34]]
        %v1090 = vstv %s1089
        %v1091 = vmul.f32 %v1090, %v1081
        %v1092 = vmul.f32 %v1090, %v1082
        %v1093 = vmul.f32 %v1090, %v1083
        %v1094 = vadd.f32 %v1086, %v1091
        %v1095 = vadd.f32 %v1087, %v1092
        %v1096 = vadd.f32 %v1088, %v1093
        %1100 = vrot.lane.b32.xlu0 %v1094, 125
        %v1101 = vpop.permute.xlu0 %1100
        %1102 = vrot.lane.b32.xlu0 %v1095, 125
        %v1103 = vpop.permute.xlu0 %1102
        %1104 = vrot.lane.b32.xlu0 %v1096, 125
        %v1105 = vpop.permute.xlu0 %1104
        %vm1106 = vcmask 1022976
        %v1107 = vsel %vm1106, %v1101, %v1103
        %v1108 = vsel %vm1106, %v1103, %v1105
        %v1111 = vadd.f32 %v1061, %v1107
        %v1112 = vadd.f32 %v1062, %v1108
        %s1113 = sld [smem:[#allocation7 + $0xa]]
        %v1114 = vstv %s1113
        %v1115 = vmul.f32 %v1114, %v1078
        %v1116 = vmul.f32 %v1114, %v1079
        %v1117 = vmul.f32 %v1114, %v1080
        %s1118 = sld [smem:[#allocation7 + $0x3b]]
        %v1119 = vstv %s1118
        %v1120 = vmul.f32 %v1119, %v1081
        %v1121 = vmul.f32 %v1119, %v1082
        %v1122 = vmul.f32 %v1119, %v1083
        %v1123 = vadd.f32 %v1115, %v1120
        %v1124 = vadd.f32 %v1116, %v1121
        %v1125 = vadd.f32 %v1117, %v1122
        %1129 = vrot.lane.b32.xlu0 %v1123, 109
        %v1130 = vpop.permute.xlu0 %1129
        %1131 = vrot.lane.b32.xlu0 %v1124, 109
        %v1132 = vpop.permute.xlu0 %1131
        %1133 = vrot.lane.b32.xlu0 %v1125, 109
        %v1134 = vpop.permute.xlu0 %1133
        %vm1135 = vcmask 891904
        %v1136 = vsel %vm1135, %v1130, %v1132
        %v1137 = vsel %vm1135, %v1132, %v1134
        %v1140 = vadd.f32 %v1111, %v1136
        %v1141 = vadd.f32 %v1112, %v1137
        %s1142 = sld [smem:[#allocation7 + $0x11]]
        %v1143 = vstv %s1142
        %v1144 = vmul.f32 %v1143, %v1078
        %v1145 = vmul.f32 %v1143, %v1079
        %v1146 = vmul.f32 %v1143, %v1080
        %s1147 = sld [smem:[#allocation7 + $0x42]]
        %v1148 = vstv %s1147
        %v1149 = vmul.f32 %v1148, %v1081
        %v1150 = vmul.f32 %v1148, %v1082
        %v1151 = vmul.f32 %v1148, %v1083
        %v1152 = vadd.f32 %v1144, %v1149
        %v1153 = vadd.f32 %v1145, %v1150
        %v1154 = vadd.f32 %v1146, %v1151
        %1158 = vrot.lane.b32.xlu0 %v1152, 93
        %v1159 = vpop.permute.xlu0 %1158
        %1160 = vrot.lane.b32.xlu0 %v1153, 93
        %v1161 = vpop.permute.xlu0 %1160
        %1162 = vrot.lane.b32.xlu0 %v1154, 93
        %v1163 = vpop.permute.xlu0 %1162
        %vm1164 = vcmask 760832
        %v1165 = vsel %vm1164, %v1159, %v1161
        %v1166 = vsel %vm1164, %v1161, %v1163
        %v1169 = vadd.f32 %v1140, %v1165
        %v1170 = vadd.f32 %v1141, %v1166
        %s1171 = sld [smem:[#allocation7 + $0x18]]
        %v1172 = vstv %s1171
        %v1173 = vmul.f32 %v1172, %v1078
        %v1174 = vmul.f32 %v1172, %v1079
        %v1175 = vmul.f32 %v1172, %v1080
        %s1176 = sld [smem:[#allocation7 + $0x49]]
        %v1177 = vstv %s1176
        %v1178 = vmul.f32 %v1177, %v1081
        %v1179 = vmul.f32 %v1177, %v1082
        %v1180 = vmul.f32 %v1177, %v1083
        %v1181 = vadd.f32 %v1173, %v1178
        %v1182 = vadd.f32 %v1174, %v1179
        %v1183 = vadd.f32 %v1175, %v1180
        %1187 = vrot.lane.b32.xlu0 %v1181, 77
        %v1188 = vpop.permute.xlu0 %1187
        %1189 = vrot.lane.b32.xlu0 %v1182, 77
        %v1190 = vpop.permute.xlu0 %1189
        %1191 = vrot.lane.b32.xlu0 %v1183, 77
        %v1192 = vpop.permute.xlu0 %1191
        %vm1193 = vcmask 629760
        %v1194 = vsel %vm1193, %v1188, %v1190
        %v1195 = vsel %vm1193, %v1190, %v1192
        %v1198 = vadd.f32 %v1169, %v1194
        %v1199 = vadd.f32 %v1170, %v1195
        %s1200 = sld [smem:[#allocation7 + $0x1f]]
        %v1201 = vstv %s1200
        %v1202 = vmul.f32 %v1201, %v1078
        %v1203 = vmul.f32 %v1201, %v1079
        %v1204 = vmul.f32 %v1201, %v1080
        %s1205 = sld [smem:[#allocation7 + $0x50]]
        %v1206 = vstv %s1205
        %v1207 = vmul.f32 %v1206, %v1081
        %v1208 = vmul.f32 %v1206, %v1082
        %v1209 = vmul.f32 %v1206, %v1083
        %v1210 = vadd.f32 %v1202, %v1207
        %v1211 = vadd.f32 %v1203, %v1208
        %v1212 = vadd.f32 %v1204, %v1209
        %1216 = vrot.lane.b32.xlu0 %v1210, 61
        %v1217 = vpop.permute.xlu0 %1216
        %1218 = vrot.lane.b32.xlu0 %v1211, 61
        %v1219 = vpop.permute.xlu0 %1218
        %1220 = vrot.lane.b32.xlu0 %v1212, 61
        %v1221 = vpop.permute.xlu0 %1220
        %vm1222 = vcmask 498688
        %v1223 = vsel %vm1222, %v1217, %v1219
        %v1224 = vsel %vm1222, %v1219, %v1221
        %v1227 = vadd.f32 %v1198, %v1223
        %v1228 = vadd.f32 %v1199, %v1224
        %s1229 = sld [smem:[#allocation7 + $0x26]]
        %v1230 = vstv %s1229
        %v1231 = vmul.f32 %v1230, %v1078
        %v1232 = vmul.f32 %v1230, %v1079
        %v1233 = vmul.f32 %v1230, %v1080
        %s1234 = sld [smem:[#allocation7 + $0x57]]
        %v1235 = vstv %s1234
        %v1236 = vmul.f32 %v1235, %v1081
        %v1237 = vmul.f32 %v1235, %v1082
        %v1238 = vmul.f32 %v1235, %v1083
        %v1239 = vadd.f32 %v1231, %v1236
        %v1240 = vadd.f32 %v1232, %v1237
        %v1241 = vadd.f32 %v1233, %v1238
        %1245 = vrot.lane.b32.xlu0 %v1239, 45
        %v1246 = vpop.permute.xlu0 %1245
        %1247 = vrot.lane.b32.xlu0 %v1240, 45
        %v1248 = vpop.permute.xlu0 %1247
        %1249 = vrot.lane.b32.xlu0 %v1241, 45
        %v1250 = vpop.permute.xlu0 %1249
        %vm1251 = vcmask 367616
        %v1252 = vsel %vm1251, %v1246, %v1248
        %v1253 = vsel %vm1251, %v1248, %v1250
        %v1256 = vadd.f32 %v1227, %v1252
        %v1257 = vadd.f32 %v1228, %v1253
        %s1258 = sld [smem:[#allocation7 + $0x2d]]
        %v1259 = vstv %s1258
        %v1260 = vmul.f32 %v1259, %v1078
        %v1261 = vmul.f32 %v1259, %v1079
        %v1262 = vmul.f32 %v1259, %v1080
        %s1263 = sld [smem:[#allocation7 + $0x5e]]
        %v1264 = vstv %s1263
        %v1265 = vmul.f32 %v1264, %v1081
        %v1266 = vmul.f32 %v1264, %v1082
        %v1267 = vmul.f32 %v1264, %v1083
        %v1268 = vadd.f32 %v1260, %v1265
        %v1269 = vadd.f32 %v1261, %v1266
        %v1270 = vadd.f32 %v1262, %v1267
        %1274 = vrot.lane.b32.xlu0 %v1268, 29
        %v1275 = vpop.permute.xlu0 %1274
        %1276 = vrot.lane.b32.xlu0 %v1269, 29
        %v1277 = vpop.permute.xlu0 %1276
        %1278 = vrot.lane.b32.xlu0 %v1270, 29
        %v1279 = vpop.permute.xlu0 %1278
        %vm1280 = vcmask 236544
        %v1281 = vsel %vm1280, %v1275, %v1277
        %v1282 = vsel %vm1280, %v1277, %v1279
        %v1285 = vadd.f32 %v1256, %v1281
        %v1286 = vadd.f32 %v1257, %v1282
        %v1287 = vrot.slane %v419, 4
        %v1288 = vrot.slane %v420, 4
        %v1289 = vrot.slane %v421, 4
        %1290 = vrot.lane.b32.xlu0 %v1287, 4
        %v1291 = vpop.permute.xlu0 %1290
        %1292 = vrot.lane.b32.xlu0 %v1288, 4
        %v1293 = vpop.permute.xlu0 %1292
        %1294 = vrot.lane.b32.xlu0 %v1289, 4
        %v1295 = vpop.permute.xlu0 %1294
        %vm1296 = vcmask 31744
        %v1297 = vsel %vm1296, %v1291, %v1293
        %v1298 = vsel %vm1296, %v1293, %v1295
        %v1302 = vmul.f32 %v405, %v1291
        %v1303 = vmul.f32 %v401, %v1297
        %v1304 = vmul.f32 %v406, %v1298
        %v1305 = vmul.f32 %v417, %v1291
        %v1306 = vmul.f32 %v413, %v1297
        %v1307 = vmul.f32 %v418, %v1298
        %s1308 = sld [smem:[#allocation7 + $0x4]]
        %v1309 = vstv %s1308
        %v1310 = vmul.f32 %v1309, %v1302
        %v1311 = vmul.f32 %v1309, %v1303
        %v1312 = vmul.f32 %v1309, %v1304
        %s1313 = sld [smem:[#allocation7 + $0x35]]
        %v1314 = vstv %s1313
        %v1315 = vmul.f32 %v1314, %v1305
        %v1316 = vmul.f32 %v1314, %v1306
        %v1317 = vmul.f32 %v1314, %v1307
        %v1318 = vadd.f32 %v1310, %v1315
        %v1319 = vadd.f32 %v1311, %v1316
        %v1320 = vadd.f32 %v1312, %v1317
        %1324 = vrot.lane.b32.xlu0 %v1318, 124
        %v1325 = vpop.permute.xlu0 %1324
        %1326 = vrot.lane.b32.xlu0 %v1319, 124
        %v1327 = vpop.permute.xlu0 %1326
        %1328 = vrot.lane.b32.xlu0 %v1320, 124
        %v1329 = vpop.permute.xlu0 %1328
        %vm1330 = vcmask 1014784
        %v1331 = vsel %vm1330, %v1325, %v1327
        %v1332 = vsel %vm1330, %v1327, %v1329
        %v1335 = vadd.f32 %v1285, %v1331
        %v1336 = vadd.f32 %v1286, %v1332
        %s1337 = sld [smem:[#allocation7 + $0xb]]
        %v1338 = vstv %s1337
        %v1339 = vmul.f32 %v1338, %v1302
        %v1340 = vmul.f32 %v1338, %v1303
        %v1341 = vmul.f32 %v1338, %v1304
        %s1342 = sld [smem:[#allocation7 + $0x3c]]
        %v1343 = vstv %s1342
        %v1344 = vmul.f32 %v1343, %v1305
        %v1345 = vmul.f32 %v1343, %v1306
        %v1346 = vmul.f32 %v1343, %v1307
        %v1347 = vadd.f32 %v1339, %v1344
        %v1348 = vadd.f32 %v1340, %v1345
        %v1349 = vadd.f32 %v1341, %v1346
        %1353 = vrot.lane.b32.xlu0 %v1347, 108
        %v1354 = vpop.permute.xlu0 %1353
        %1355 = vrot.lane.b32.xlu0 %v1348, 108
        %v1356 = vpop.permute.xlu0 %1355
        %1357 = vrot.lane.b32.xlu0 %v1349, 108
        %v1358 = vpop.permute.xlu0 %1357
        %vm1359 = vcmask 883712
        %v1360 = vsel %vm1359, %v1354, %v1356
        %v1361 = vsel %vm1359, %v1356, %v1358
        %v1364 = vadd.f32 %v1335, %v1360
        %v1365 = vadd.f32 %v1336, %v1361
        %s1366 = sld [smem:[#allocation7 + $0x12]]
        %v1367 = vstv %s1366
        %v1368 = vmul.f32 %v1367, %v1302
        %v1369 = vmul.f32 %v1367, %v1303
        %v1370 = vmul.f32 %v1367, %v1304
        %s1371 = sld [smem:[#allocation7 + $0x43]]
        %v1372 = vstv %s1371
        %v1373 = vmul.f32 %v1372, %v1305
        %v1374 = vmul.f32 %v1372, %v1306
        %v1375 = vmul.f32 %v1372, %v1307
        %v1376 = vadd.f32 %v1368, %v1373
        %v1377 = vadd.f32 %v1369, %v1374
        %v1378 = vadd.f32 %v1370, %v1375
        %1382 = vrot.lane.b32.xlu0 %v1376, 92
        %v1383 = vpop.permute.xlu0 %1382
        %1384 = vrot.lane.b32.xlu0 %v1377, 92
        %v1385 = vpop.permute.xlu0 %1384
        %1386 = vrot.lane.b32.xlu0 %v1378, 92
        %v1387 = vpop.permute.xlu0 %1386
        %vm1388 = vcmask 752640
        %v1389 = vsel %vm1388, %v1383, %v1385
        %v1390 = vsel %vm1388, %v1385, %v1387
        %v1393 = vadd.f32 %v1364, %v1389
        %v1394 = vadd.f32 %v1365, %v1390
        %s1395 = sld [smem:[#allocation7 + $0x19]]
        %v1396 = vstv %s1395
        %v1397 = vmul.f32 %v1396, %v1302
        %v1398 = vmul.f32 %v1396, %v1303
        %v1399 = vmul.f32 %v1396, %v1304
        %s1400 = sld [smem:[#allocation7 + $0x4a]]
        %v1401 = vstv %s1400
        %v1402 = vmul.f32 %v1401, %v1305
        %v1403 = vmul.f32 %v1401, %v1306
        %v1404 = vmul.f32 %v1401, %v1307
        %v1405 = vadd.f32 %v1397, %v1402
        %v1406 = vadd.f32 %v1398, %v1403
        %v1407 = vadd.f32 %v1399, %v1404
        %1411 = vrot.lane.b32.xlu0 %v1405, 76
        %v1412 = vpop.permute.xlu0 %1411
        %1413 = vrot.lane.b32.xlu0 %v1406, 76
        %v1414 = vpop.permute.xlu0 %1413
        %1415 = vrot.lane.b32.xlu0 %v1407, 76
        %v1416 = vpop.permute.xlu0 %1415
        %vm1417 = vcmask 621568
        %v1418 = vsel %vm1417, %v1412, %v1414
        %v1419 = vsel %vm1417, %v1414, %v1416
        %v1422 = vadd.f32 %v1393, %v1418
        %v1423 = vadd.f32 %v1394, %v1419
        %s1424 = sld [smem:[#allocation7 + $0x20]]
        %v1425 = vstv %s1424
        %v1426 = vmul.f32 %v1425, %v1302
        %v1427 = vmul.f32 %v1425, %v1303
        %v1428 = vmul.f32 %v1425, %v1304
        %s1429 = sld [smem:[#allocation7 + $0x51]]
        %v1430 = vstv %s1429
        %v1431 = vmul.f32 %v1430, %v1305
        %v1432 = vmul.f32 %v1430, %v1306
        %v1433 = vmul.f32 %v1430, %v1307
        %v1434 = vadd.f32 %v1426, %v1431
        %v1435 = vadd.f32 %v1427, %v1432
        %v1436 = vadd.f32 %v1428, %v1433
        %1440 = vrot.lane.b32.xlu0 %v1434, 60
        %v1441 = vpop.permute.xlu0 %1440
        %1442 = vrot.lane.b32.xlu0 %v1435, 60
        %v1443 = vpop.permute.xlu0 %1442
        %1444 = vrot.lane.b32.xlu0 %v1436, 60
        %v1445 = vpop.permute.xlu0 %1444
        %vm1446 = vcmask 490496
        %v1447 = vsel %vm1446, %v1441, %v1443
        %v1448 = vsel %vm1446, %v1443, %v1445
        %v1451 = vadd.f32 %v1422, %v1447
        %v1452 = vadd.f32 %v1423, %v1448
        %s1453 = sld [smem:[#allocation7 + $0x27]]
        %v1454 = vstv %s1453
        %v1455 = vmul.f32 %v1454, %v1302
        %v1456 = vmul.f32 %v1454, %v1303
        %v1457 = vmul.f32 %v1454, %v1304
        %s1458 = sld [smem:[#allocation7 + $0x58]]
        %v1459 = vstv %s1458
        %v1460 = vmul.f32 %v1459, %v1305
        %v1461 = vmul.f32 %v1459, %v1306
        %v1462 = vmul.f32 %v1459, %v1307
        %v1463 = vadd.f32 %v1455, %v1460
        %v1464 = vadd.f32 %v1456, %v1461
        %v1465 = vadd.f32 %v1457, %v1462
        %1469 = vrot.lane.b32.xlu0 %v1463, 44
        %v1470 = vpop.permute.xlu0 %1469
        %1471 = vrot.lane.b32.xlu0 %v1464, 44
        %v1472 = vpop.permute.xlu0 %1471
        %1473 = vrot.lane.b32.xlu0 %v1465, 44
        %v1474 = vpop.permute.xlu0 %1473
        %vm1475 = vcmask 359424
        %v1476 = vsel %vm1475, %v1470, %v1472
        %v1477 = vsel %vm1475, %v1472, %v1474
        %v1480 = vadd.f32 %v1451, %v1476
        %v1481 = vadd.f32 %v1452, %v1477
        %s1482 = sld [smem:[#allocation7 + $0x2e]]
        %v1483 = vstv %s1482
        %v1484 = vmul.f32 %v1483, %v1302
        %v1485 = vmul.f32 %v1483, %v1303
        %v1486 = vmul.f32 %v1483, %v1304
        %s1487 = sld [smem:[#allocation7 + $0x5f]]
        %v1488 = vstv %s1487
        %v1489 = vmul.f32 %v1488, %v1305
        %v1490 = vmul.f32 %v1488, %v1306
        %v1491 = vmul.f32 %v1488, %v1307
        %v1492 = vadd.f32 %v1484, %v1489
        %v1493 = vadd.f32 %v1485, %v1490
        %v1494 = vadd.f32 %v1486, %v1491
        %1498 = vrot.lane.b32.xlu0 %v1492, 28
        %v1499 = vpop.permute.xlu0 %1498
        %1500 = vrot.lane.b32.xlu0 %v1493, 28
        %v1501 = vpop.permute.xlu0 %1500
        %1502 = vrot.lane.b32.xlu0 %v1494, 28
        %v1503 = vpop.permute.xlu0 %1502
        %vm1504 = vcmask 228352
        %v1505 = vsel %vm1504, %v1499, %v1501
        %v1506 = vsel %vm1504, %v1501, %v1503
        %v1509 = vadd.f32 %v1480, %v1505
        %v1510 = vadd.f32 %v1481, %v1506
        %v1511 = vrot.slane %v419, 5
        %v1512 = vrot.slane %v420, 5
        %v1513 = vrot.slane %v421, 5
        %1514 = vrot.lane.b32.xlu0 %v1511, 5
        %v1515 = vpop.permute.xlu0 %1514
        %1516 = vrot.lane.b32.xlu0 %v1512, 5
        %v1517 = vpop.permute.xlu0 %1516
        %1518 = vrot.lane.b32.xlu0 %v1513, 5
        %v1519 = vpop.permute.xlu0 %1518
        %vm1520 = vcmask 39936
        %v1521 = vsel %vm1520, %v1515, %v1517
        %v1522 = vsel %vm1520, %v1517, %v1519
        %v1526 = vmul.f32 %v405, %v1515
        %v1527 = vmul.f32 %v401, %v1521
        %v1528 = vmul.f32 %v406, %v1522
        %v1529 = vmul.f32 %v417, %v1515
        %v1530 = vmul.f32 %v413, %v1521
        %v1531 = vmul.f32 %v418, %v1522
        %s1532 = sld [smem:[#allocation7 + $0x5]]
        %v1533 = vstv %s1532
        %v1534 = vmul.f32 %v1533, %v1526
        %v1535 = vmul.f32 %v1533, %v1527
        %v1536 = vmul.f32 %v1533, %v1528
        %s1537 = sld [smem:[#allocation7 + $0x36]]
        %v1538 = vstv %s1537
        %v1539 = vmul.f32 %v1538, %v1529
        %v1540 = vmul.f32 %v1538, %v1530
        %v1541 = vmul.f32 %v1538, %v1531
        %v1542 = vadd.f32 %v1534, %v1539
        %v1543 = vadd.f32 %v1535, %v1540
        %v1544 = vadd.f32 %v1536, %v1541
        %1548 = vrot.lane.b32.xlu0 %v1542, 123
        %v1549 = vpop.permute.xlu0 %1548
        %1550 = vrot.lane.b32.xlu0 %v1543, 123
        %v1551 = vpop.permute.xlu0 %1550
        %1552 = vrot.lane.b32.xlu0 %v1544, 123
        %v1553 = vpop.permute.xlu0 %1552
        %vm1554 = vcmask 1006592
        %v1555 = vsel %vm1554, %v1549, %v1551
        %v1556 = vsel %vm1554, %v1551, %v1553
        %v1559 = vadd.f32 %v1509, %v1555
        %v1560 = vadd.f32 %v1510, %v1556
        %s1561 = sld [smem:[#allocation7 + $0xc]]
        %v1562 = vstv %s1561
        %v1563 = vmul.f32 %v1562, %v1526
        %v1564 = vmul.f32 %v1562, %v1527
        %v1565 = vmul.f32 %v1562, %v1528
        %s1566 = sld [smem:[#allocation7 + $0x3d]]
        %v1567 = vstv %s1566
        %v1568 = vmul.f32 %v1567, %v1529
        %v1569 = vmul.f32 %v1567, %v1530
        %v1570 = vmul.f32 %v1567, %v1531
        %v1571 = vadd.f32 %v1563, %v1568
        %v1572 = vadd.f32 %v1564, %v1569
        %v1573 = vadd.f32 %v1565, %v1570
        %1577 = vrot.lane.b32.xlu0 %v1571, 107
        %v1578 = vpop.permute.xlu0 %1577
        %1579 = vrot.lane.b32.xlu0 %v1572, 107
        %v1580 = vpop.permute.xlu0 %1579
        %1581 = vrot.lane.b32.xlu0 %v1573, 107
        %v1582 = vpop.permute.xlu0 %1581
        %vm1583 = vcmask 875520
        %v1584 = vsel %vm1583, %v1578, %v1580
        %v1585 = vsel %vm1583, %v1580, %v1582
        %v1588 = vadd.f32 %v1559, %v1584
        %v1589 = vadd.f32 %v1560, %v1585
        %s1590 = sld [smem:[#allocation7 + $0x13]]
        %v1591 = vstv %s1590
        %v1592 = vmul.f32 %v1591, %v1526
        %v1593 = vmul.f32 %v1591, %v1527
        %v1594 = vmul.f32 %v1591, %v1528
        %s1595 = sld [smem:[#allocation7 + $0x44]]
        %v1596 = vstv %s1595
        %v1597 = vmul.f32 %v1596, %v1529
        %v1598 = vmul.f32 %v1596, %v1530
        %v1599 = vmul.f32 %v1596, %v1531
        %v1600 = vadd.f32 %v1592, %v1597
        %v1601 = vadd.f32 %v1593, %v1598
        %v1602 = vadd.f32 %v1594, %v1599
        %1606 = vrot.lane.b32.xlu0 %v1600, 91
        %v1607 = vpop.permute.xlu0 %1606
        %1608 = vrot.lane.b32.xlu0 %v1601, 91
        %v1609 = vpop.permute.xlu0 %1608
        %1610 = vrot.lane.b32.xlu0 %v1602, 91
        %v1611 = vpop.permute.xlu0 %1610
        %vm1612 = vcmask 744448
        %v1613 = vsel %vm1612, %v1607, %v1609
        %v1614 = vsel %vm1612, %v1609, %v1611
        %v1617 = vadd.f32 %v1588, %v1613
        %v1618 = vadd.f32 %v1589, %v1614
        %s1619 = sld [smem:[#allocation7 + $0x1a]]
        %v1620 = vstv %s1619
        %v1621 = vmul.f32 %v1620, %v1526
        %v1622 = vmul.f32 %v1620, %v1527
        %v1623 = vmul.f32 %v1620, %v1528
        %s1624 = sld [smem:[#allocation7 + $0x4b]]
        %v1625 = vstv %s1624
        %v1626 = vmul.f32 %v1625, %v1529
        %v1627 = vmul.f32 %v1625, %v1530
        %v1628 = vmul.f32 %v1625, %v1531
        %v1629 = vadd.f32 %v1621, %v1626
        %v1630 = vadd.f32 %v1622, %v1627
        %v1631 = vadd.f32 %v1623, %v1628
        %1635 = vrot.lane.b32.xlu0 %v1629, 75
        %v1636 = vpop.permute.xlu0 %1635
        %1637 = vrot.lane.b32.xlu0 %v1630, 75
        %v1638 = vpop.permute.xlu0 %1637
        %1639 = vrot.lane.b32.xlu0 %v1631, 75
        %v1640 = vpop.permute.xlu0 %1639
        %vm1641 = vcmask 613376
        %v1642 = vsel %vm1641, %v1636, %v1638
        %v1643 = vsel %vm1641, %v1638, %v1640
        %v1646 = vadd.f32 %v1617, %v1642
        %v1647 = vadd.f32 %v1618, %v1643
        %s1648 = sld [smem:[#allocation7 + $0x21]]
        %v1649 = vstv %s1648
        %v1650 = vmul.f32 %v1649, %v1526
        %v1651 = vmul.f32 %v1649, %v1527
        %v1652 = vmul.f32 %v1649, %v1528
        %s1653 = sld [smem:[#allocation7 + $0x52]]
        %v1654 = vstv %s1653
        %v1655 = vmul.f32 %v1654, %v1529
        %v1656 = vmul.f32 %v1654, %v1530
        %v1657 = vmul.f32 %v1654, %v1531
        %v1658 = vadd.f32 %v1650, %v1655
        %v1659 = vadd.f32 %v1651, %v1656
        %v1660 = vadd.f32 %v1652, %v1657
        %1664 = vrot.lane.b32.xlu0 %v1658, 59
        %v1665 = vpop.permute.xlu0 %1664
        %1666 = vrot.lane.b32.xlu0 %v1659, 59
        %v1667 = vpop.permute.xlu0 %1666
        %1668 = vrot.lane.b32.xlu0 %v1660, 59
        %v1669 = vpop.permute.xlu0 %1668
        %vm1670 = vcmask 482304
        %v1671 = vsel %vm1670, %v1665, %v1667
        %v1672 = vsel %vm1670, %v1667, %v1669
        %v1675 = vadd.f32 %v1646, %v1671
        %v1676 = vadd.f32 %v1647, %v1672
        %s1677 = sld [smem:[#allocation7 + $0x28]]
        %v1678 = vstv %s1677
        %v1679 = vmul.f32 %v1678, %v1526
        %v1680 = vmul.f32 %v1678, %v1527
        %v1681 = vmul.f32 %v1678, %v1528
        %s1682 = sld [smem:[#allocation7 + $0x59]]
        %v1683 = vstv %s1682
        %v1684 = vmul.f32 %v1683, %v1529
        %v1685 = vmul.f32 %v1683, %v1530
        %v1686 = vmul.f32 %v1683, %v1531
        %v1687 = vadd.f32 %v1679, %v1684
        %v1688 = vadd.f32 %v1680, %v1685
        %v1689 = vadd.f32 %v1681, %v1686
        %1693 = vrot.lane.b32.xlu0 %v1687, 43
        %v1694 = vpop.permute.xlu0 %1693
        %1695 = vrot.lane.b32.xlu0 %v1688, 43
        %v1696 = vpop.permute.xlu0 %1695
        %1697 = vrot.lane.b32.xlu0 %v1689, 43
        %v1698 = vpop.permute.xlu0 %1697
        %vm1699 = vcmask 351232
        %v1700 = vsel %vm1699, %v1694, %v1696
        %v1701 = vsel %vm1699, %v1696, %v1698
        %v1704 = vadd.f32 %v1675, %v1700
        %v1705 = vadd.f32 %v1676, %v1701
        %s1706 = sld [smem:[#allocation7 + $0x2f]]
        %v1707 = vstv %s1706
        %v1708 = vmul.f32 %v1707, %v1526
        %v1709 = vmul.f32 %v1707, %v1527
        %v1710 = vmul.f32 %v1707, %v1528
        %s1711 = sld [smem:[#allocation7 + $0x60]]
        %v1712 = vstv %s1711
        %v1713 = vmul.f32 %v1712, %v1529
        %v1714 = vmul.f32 %v1712, %v1530
        %v1715 = vmul.f32 %v1712, %v1531
        %v1716 = vadd.f32 %v1708, %v1713
        %v1717 = vadd.f32 %v1709, %v1714
        %v1718 = vadd.f32 %v1710, %v1715
        %1722 = vrot.lane.b32.xlu0 %v1716, 27
        %v1723 = vpop.permute.xlu0 %1722
        %1724 = vrot.lane.b32.xlu0 %v1717, 27
        %v1725 = vpop.permute.xlu0 %1724
        %1726 = vrot.lane.b32.xlu0 %v1718, 27
        %v1727 = vpop.permute.xlu0 %1726
        %vm1728 = vcmask 220160
        %v1729 = vsel %vm1728, %v1723, %v1725
        %v1730 = vsel %vm1728, %v1725, %v1727
        %v1733 = vadd.f32 %v1704, %v1729
        %v1734 = vadd.f32 %v1705, %v1730
        %v1735 = vrot.slane %v419, 6
        %v1736 = vrot.slane %v420, 6
        %v1737 = vrot.slane %v421, 6
        %1738 = vrot.lane.b32.xlu0 %v1735, 6
        %v1739 = vpop.permute.xlu0 %1738
        %1740 = vrot.lane.b32.xlu0 %v1736, 6
        %v1741 = vpop.permute.xlu0 %1740
        %1742 = vrot.lane.b32.xlu0 %v1737, 6
        %v1743 = vpop.permute.xlu0 %1742
        %vm1744 = vcmask 48128
        %v1745 = vsel %vm1744, %v1739, %v1741
        %v1746 = vsel %vm1744, %v1741, %v1743
        %v1750 = vmul.f32 %v405, %v1739
        %v1751 = vmul.f32 %v401, %v1745
        %v1752 = vmul.f32 %v406, %v1746
        %v1753 = vmul.f32 %v417, %v1739
        %v1754 = vmul.f32 %v413, %v1745
        %v1755 = vmul.f32 %v418, %v1746
        %s1756 = sld [smem:[#allocation7 + $0x6]]
        %v1757 = vstv %s1756
        %v1758 = vmul.f32 %v1757, %v1750
        %v1759 = vmul.f32 %v1757, %v1751
        %v1760 = vmul.f32 %v1757, %v1752
        %s1761 = sld [smem:[#allocation7 + $0x37]]
        %v1762 = vstv %s1761
        %v1763 = vmul.f32 %v1762, %v1753
        %v1764 = vmul.f32 %v1762, %v1754
        %v1765 = vmul.f32 %v1762, %v1755
        %v1766 = vadd.f32 %v1758, %v1763
        %v1767 = vadd.f32 %v1759, %v1764
        %v1768 = vadd.f32 %v1760, %v1765
        %1772 = vrot.lane.b32.xlu0 %v1766, 122
        %v1773 = vpop.permute.xlu0 %1772
        %1774 = vrot.lane.b32.xlu0 %v1767, 122
        %v1775 = vpop.permute.xlu0 %1774
        %1776 = vrot.lane.b32.xlu0 %v1768, 122
        %v1777 = vpop.permute.xlu0 %1776
        %vm1778 = vcmask 998400
        %v1779 = vsel %vm1778, %v1773, %v1775
        %v1780 = vsel %vm1778, %v1775, %v1777
        %v1783 = vadd.f32 %v1733, %v1779
        %v1784 = vadd.f32 %v1734, %v1780
        %s1785 = sld [smem:[#allocation7 + $0xd]]
        %v1786 = vstv %s1785
        %v1787 = vmul.f32 %v1786, %v1750
        %v1788 = vmul.f32 %v1786, %v1751
        %v1789 = vmul.f32 %v1786, %v1752
        %s1790 = sld [smem:[#allocation7 + $0x3e]]
        %v1791 = vstv %s1790
        %v1792 = vmul.f32 %v1791, %v1753
        %v1793 = vmul.f32 %v1791, %v1754
        %v1794 = vmul.f32 %v1791, %v1755
        %v1795 = vadd.f32 %v1787, %v1792
        %v1796 = vadd.f32 %v1788, %v1793
        %v1797 = vadd.f32 %v1789, %v1794
        %1801 = vrot.lane.b32.xlu0 %v1795, 106
        %v1802 = vpop.permute.xlu0 %1801
        %1803 = vrot.lane.b32.xlu0 %v1796, 106
        %v1804 = vpop.permute.xlu0 %1803
        %1805 = vrot.lane.b32.xlu0 %v1797, 106
        %v1806 = vpop.permute.xlu0 %1805
        %vm1807 = vcmask 867328
        %v1808 = vsel %vm1807, %v1802, %v1804
        %v1809 = vsel %vm1807, %v1804, %v1806
        %v1812 = vadd.f32 %v1783, %v1808
        %v1813 = vadd.f32 %v1784, %v1809
        %s1814 = sld [smem:[#allocation7 + $0x14]]
        %v1815 = vstv %s1814
        %v1816 = vmul.f32 %v1815, %v1750
        %v1817 = vmul.f32 %v1815, %v1751
        %v1818 = vmul.f32 %v1815, %v1752
        %s1819 = sld [smem:[#allocation7 + $0x45]]
        %v1820 = vstv %s1819
        %v1821 = vmul.f32 %v1820, %v1753
        %v1822 = vmul.f32 %v1820, %v1754
        %v1823 = vmul.f32 %v1820, %v1755
        %v1824 = vadd.f32 %v1816, %v1821
        %v1825 = vadd.f32 %v1817, %v1822
        %v1826 = vadd.f32 %v1818, %v1823
        %1830 = vrot.lane.b32.xlu0 %v1824, 90
        %v1831 = vpop.permute.xlu0 %1830
        %1832 = vrot.lane.b32.xlu0 %v1825, 90
        %v1833 = vpop.permute.xlu0 %1832
        %1834 = vrot.lane.b32.xlu0 %v1826, 90
        %v1835 = vpop.permute.xlu0 %1834
        %vm1836 = vcmask 736256
        %v1837 = vsel %vm1836, %v1831, %v1833
        %v1838 = vsel %vm1836, %v1833, %v1835
        %v1841 = vadd.f32 %v1812, %v1837
        %v1842 = vadd.f32 %v1813, %v1838
        %s1843 = sld [smem:[#allocation7 + $0x1b]]
        %v1844 = vstv %s1843
        %v1845 = vmul.f32 %v1844, %v1750
        %v1846 = vmul.f32 %v1844, %v1751
        %v1847 = vmul.f32 %v1844, %v1752
        %s1848 = sld [smem:[#allocation7 + $0x4c]]
        %v1849 = vstv %s1848
        %v1850 = vmul.f32 %v1849, %v1753
        %v1851 = vmul.f32 %v1849, %v1754
        %v1852 = vmul.f32 %v1849, %v1755
        %v1853 = vadd.f32 %v1845, %v1850
        %v1854 = vadd.f32 %v1846, %v1851
        %v1855 = vadd.f32 %v1847, %v1852
        %1859 = vrot.lane.b32.xlu0 %v1853, 74
        %v1860 = vpop.permute.xlu0 %1859
        %1861 = vrot.lane.b32.xlu0 %v1854, 74
        %v1862 = vpop.permute.xlu0 %1861
        %1863 = vrot.lane.b32.xlu0 %v1855, 74
        %v1864 = vpop.permute.xlu0 %1863
        %vm1865 = vcmask 605184
        %v1866 = vsel %vm1865, %v1860, %v1862
        %v1867 = vsel %vm1865, %v1862, %v1864
        %v1870 = vadd.f32 %v1841, %v1866
        %v1871 = vadd.f32 %v1842, %v1867
        %s1872 = sld [smem:[#allocation7 + $0x22]]
        %v1873 = vstv %s1872
        %v1874 = vmul.f32 %v1873, %v1750
        %v1875 = vmul.f32 %v1873, %v1751
        %v1876 = vmul.f32 %v1873, %v1752
        %s1877 = sld [smem:[#allocation7 + $0x53]]
        %v1878 = vstv %s1877
        %v1879 = vmul.f32 %v1878, %v1753
        %v1880 = vmul.f32 %v1878, %v1754
        %v1881 = vmul.f32 %v1878, %v1755
        %v1882 = vadd.f32 %v1874, %v1879
        %v1883 = vadd.f32 %v1875, %v1880
        %v1884 = vadd.f32 %v1876, %v1881
        %1888 = vrot.lane.b32.xlu0 %v1882, 58
        %v1889 = vpop.permute.xlu0 %1888
        %1890 = vrot.lane.b32.xlu0 %v1883, 58
        %v1891 = vpop.permute.xlu0 %1890
        %1892 = vrot.lane.b32.xlu0 %v1884, 58
        %v1893 = vpop.permute.xlu0 %1892
        %vm1894 = vcmask 474112
        %v1895 = vsel %vm1894, %v1889, %v1891
        %v1896 = vsel %vm1894, %v1891, %v1893
        %v1899 = vadd.f32 %v1870, %v1895
        %v1900 = vadd.f32 %v1871, %v1896
        %s1901 = sld [smem:[#allocation7 + $0x29]]
        %v1902 = vstv %s1901
        %v1903 = vmul.f32 %v1902, %v1750
        %v1904 = vmul.f32 %v1902, %v1751
        %v1905 = vmul.f32 %v1902, %v1752
        %s1906 = sld [smem:[#allocation7 + $0x5a]]
        %v1907 = vstv %s1906
        %v1908 = vmul.f32 %v1907, %v1753
        %v1909 = vmul.f32 %v1907, %v1754
        %v1910 = vmul.f32 %v1907, %v1755
        %v1911 = vadd.f32 %v1903, %v1908
        %v1912 = vadd.f32 %v1904, %v1909
        %v1913 = vadd.f32 %v1905, %v1910
        %1917 = vrot.lane.b32.xlu0 %v1911, 42
        %v1918 = vpop.permute.xlu0 %1917
        %1919 = vrot.lane.b32.xlu0 %v1912, 42
        %v1920 = vpop.permute.xlu0 %1919
        %1921 = vrot.lane.b32.xlu0 %v1913, 42
        %v1922 = vpop.permute.xlu0 %1921
        %vm1923 = vcmask 343040
        %v1924 = vsel %vm1923, %v1918, %v1920
        %v1925 = vsel %vm1923, %v1920, %v1922
        %v1928 = vadd.f32 %v1899, %v1924
        %v1929 = vadd.f32 %v1900, %v1925
        %s1930 = sld [smem:[#allocation7 + $0x30]]
        %v1931 = vstv %s1930
        %v1932 = vmul.f32 %v1931, %v1750
        %v1933 = vmul.f32 %v1931, %v1751
        %v1934 = vmul.f32 %v1931, %v1752
        %s1935 = sld [smem:[#allocation7 + $0x61]]
        %v1936 = vstv %s1935
        %v1937 = vmul.f32 %v1936, %v1753
        %v1938 = vmul.f32 %v1936, %v1754
        %v1939 = vmul.f32 %v1936, %v1755
        %v1940 = vadd.f32 %v1932, %v1937
        %v1941 = vadd.f32 %v1933, %v1938
        %v1942 = vadd.f32 %v1934, %v1939
        %1946 = vrot.lane.b32.xlu0 %v1940, 26
        %v1947 = vpop.permute.xlu0 %1946
        %1948 = vrot.lane.b32.xlu0 %v1941, 26
        %v1949 = vpop.permute.xlu0 %1948
        %1950 = vrot.lane.b32.xlu0 %v1942, 26
        %v1951 = vpop.permute.xlu0 %1950
        %vm1952 = vcmask 211968
        %v1953 = vsel %vm1952, %v1947, %v1949
        %v1954 = vsel %vm1952, %v1949, %v1951
        %v1957 = vadd.f32 %v1928, %v1953
        %v1958 = vadd.f32 %v1929, %v1954
        %s1959 = sld [smem:[#allocation2]]
        %v1960 = vstv %s1959
        %v1961 = vadd.f32 %v1957, %v1960
        %v1962 = vadd.f32 %v1958, %v1960
        %v1963 = vxor.u32 %v1961, 2147483648
        %v1964 = vxor.u32 %v1962, 2147483648
        %v1965 = vmul.f32 %v1963, 1.442695
        %v1966 = vpow.pop %v1965
        %v1967 = vmul.f32 %v1964, 1.442695
        %v1968 = vpow.pop %v1967
        %v1969 = vadd.f32 %v1966, 1.0
        %v1970 = vadd.f32 %v1968, 1.0
        %v1971 = vrcp.pop %v1969
        %v1972 = vmul.f32 %v1969, %v1971
        %v1973 = vsub.f32 1.0, %v1972
        %v1974 = vmul.f32 %v1971, %v1973
        %v1975 = vadd.f32 %v1971, %v1974
        %vm1976 = vweird.f32 %v1969
        %vm1977 = vweird.f32 %v1971
        %vm1978 = vmor %vm1976, %vm1977
        %v1979 = vsel %vm1978, %v1971, %v1975
        %v1980 = vand.u32 2147483647, %v1969
        %vm1981 = vcmp.eq.f32.partialorder %v1980, 8.507059e+37
        %v1982 = vand.u32 %v1969, 2147483648
        %v1983 = vor.u32 1.1754944e-38, %v1982
        %v1984 = vsel %vm1981, %v1983, %v1979
        %v1985 = vmul.f32 1.0, %v1984
        %v1986 = vrcp.pop %v1970
        %v1987 = vmul.f32 %v1970, %v1986
        %v1988 = vsub.f32 1.0, %v1987
        %v1989 = vmul.f32 %v1986, %v1988
        %v1990 = vadd.f32 %v1986, %v1989
        %vm1991 = vweird.f32 %v1970
        %vm1992 = vweird.f32 %v1986
        %vm1993 = vmor %vm1991, %vm1992
        %v1994 = vsel %vm1993, %v1986, %v1990
        %v1995 = vand.u32 2147483647, %v1970
        %vm1996 = vcmp.eq.f32.partialorder %v1995, 8.507059e+37
        %v1997 = vand.u32 %v1970, 2147483648
        %v1998 = vor.u32 1.1754944e-38, %v1997
        %v1999 = vsel %vm1996, %v1998, %v1994
        %v2000 = vmul.f32 1.0, %v1999
        %v2001 = vperm.slane %v1985, 0
        %v2002 = vperm.slane %v2000, 0
        %v2005 = vrot.slane %v2002, 4
        %v2006 = vsel %vm293, %v2001, %v2005
        %v2008 = vmul.f32 %v352, %v2006
        %2009 = vst [vmem:[%s285] sm:$0xff] %v2008
        %s2010 = sand.u32 %s144, 1
        %s2011 = scalar_lea.sflag [#allocation5], %s2010
        %s2012 = sand.u32 %s144, 1
        %s2013 = smul.addr %s2012, 8
        %s2014 = scalar_lea.vmem [#allocation12], %s2013
        // Predicated region
        $region57: #{tpu_custom_call.1} parent=39 // pred_check
          %p2015 = pneg %p154
        $region58: #{tpu_custom_call.1} parent=39 // pred_check_branch
          %2017 = sbr.rel (%p2015) target = $region60
        $region59: #{tpu_custom_call.1} parent=39 // pred_region
          %2019 = vsyncadd %s2011, 0
          %s2020 = smul.addr %s26, 2
          %s2021 = smul.addr %s2020, 4
          %s2022 = scalar_lea.hbm %s5, %s2021
          %s2024 = sshll.u32 %s2014, 4
          %s2025 = int_to_ptr.vmem [resolvable:$true] %s2024
          %s2026 = sshll.u32 %s2022, 4
          %s2027 = int_to_ptr.hbm [resolvable:$true] %s2026
          %2029 = dma.vmem_to_hbm [thread:$0]  %s2025, 128, %s2027, %s2011
        $region60: #{tpu_custom_call.1} parent=39 // pred_fallthru
          _
      $region40: #{tpu_custom_call.1} parent=5 // pred_fallthru
        _
      %p2030 = scmp.le.s32.totalorder 2, %s21
      // Predicated region
      $region61: #{tpu_custom_call.1} parent=5 // pred_check
        %p2031 = pneg %p2030
      $region62: #{tpu_custom_call.1} parent=5 // pred_check_branch
        %2033 = sbr.rel (%p2031) target = $region64
      $region63: #{tpu_custom_call.1} parent=5 // pred_region
        %s2034 = ssub.s32 %s21, 2
        // Predicated region
        $region65: #{tpu_custom_call.1} parent=63 // pred_check
          %p2035 = pneg %p160
        $region66: #{tpu_custom_call.1} parent=63 // pred_check_branch
          %2037 = sbr.rel (%p2035) target = $region68
        $region67: #{tpu_custom_call.1} parent=63 // pred_region
          %s2038 = sand.u32 %s145, 1
          %s2039 = scalar_lea.sflag [#allocation5], %s2038
          %s2040 = sand.u32 %s145, 1
          %s2041 = smul.addr %s2040, 8
          %s2042 = scalar_lea.vmem [#allocation12], %s2041
          %2044 = dma.done %s2039, 128
        $region68: #{tpu_custom_call.1} parent=63 // pred_fallthru
          _
      $region64: #{tpu_custom_call.1} parent=5 // pred_fallthru
        _
    $region6: #{tpu_custom_call.1} parent=1 // loop_footer
      %s25 = sadd.s32 1, %s21
    $region7: #{tpu_custom_call.1} parent=1 // loop_footer_branch
      %20 = sbr.rel target = $region3
    $region8: #{tpu_custom_call.1} parent=1 // loop_exit
      _
    %2045 = vsyncpa [#allocation4], 1
    %s2046 = scalar_lea.sflag [#allocation4], 1
    %2047 = vsyncpa %s2046, 1
    %2048 = vsyncpa [#allocation11], 1
    %s2049 = scalar_lea.sflag [#allocation11], 1
    %2050 = vsyncpa %s2049, 1
    %2051 = vsyncpa [#allocation5], 1
    %s2052 = scalar_lea.sflag [#allocation5], 1
    %2053 = vsyncpa %s2052, 1
    %2054 = vsyncpa [#allocation6], 1
    %s2055 = scalar_lea.sflag [#allocation6], 1
    %2056 = vsyncpa %s2055, 1
    %2057 = vsyncpa [#allocation8], 1

</llo_original>
